<compile_context>
chip_gen: v5e
topology: v5e:2x2
jax: 0.10.0
libtpu: 0.0.40
codegen_flags: <defaults>
</compile_context>

<pallas_src>
import functools

import jax
import jax.numpy as jnp
from jax.experimental import pallas as pl
from jax.experimental.pallas import tpu as pltpu

OPS_LIST = ['avg_pool_3x3', 'max_pool_3x3', 'dense_layer_relu', 'dense_layer_sigmoid',
            'dense_layer_tanh', 'group_dense_4_relu', 'group_dense_4_sigmoid',
            'group_dense_4_tanh', 'none']
NUM_OPS = len(OPS_LIST)
NUM_ACTS = 4          # relu, sigmoid, tanh, skip
BN_EPS = 1e-5


# ----------------------------------------------------------------------------
# Edge / cell structure (mirrors search_classifier.__init__)
# ----------------------------------------------------------------------------
def _edge_structure(node_num, c_in):
    c_half = c_in // 2
    edges = {}
    for i in range(1, node_num + 1):
        for j in range(i):
            cin = c_in if j == 0 else c_half      # cin = C_in if j==0 else C_in//2
            cout = c_half                          # cout = cin//2 if j<1 else cin
            edges[f"{j}->{i}"] = (j, i, cin, cout)
    edge_keys = sorted(edges.keys())               # matches sorted(self.ops.keys())
    return edge_keys, edges


# ----------------------------------------------------------------------------
# Pallas kernel
# ----------------------------------------------------------------------------
def _make_kernel(node_num, c_in, c_out, batch):
    edge_keys, edges = _edge_structure(node_num, c_in)
    edge2index = {k: i for i, k in enumerate(edge_keys)}
    c_half = c_in // 2
    cin_max = c_in                         # bias lives in row `cin_max` of each slab

    def kernel(x_ref, wb_ref, fin_ref, aidx_ref, lidx_ref, ahw_ref, lhw_ref, out_ref):

        def batch_norm(y):
            # BatchNorm2d(affine=False), training mode: batch statistics on a 1x1 map.
            mu = jnp.mean(y, axis=0, keepdims=True)
            var = jnp.mean((y - mu) ** 2, axis=0, keepdims=True)
            return (y - mu) * jax.lax.rsqrt(var + BN_EPS)

        def channel_pool(h, cin, cout, pool):
            # A 3x3 spatial pool on a 1x1 feature map is the identity; when the edge
            # changes the channel count we reduce contiguous channel groups.
            # TODO(synk): the OPS dict source was not provided; this channel-reduction
            # rule for cin != cout pooling edges is an assumption.
            if cin == cout:
                return h
            r = cin // cout
            acc = h[:, 0:cout]
            for t in range(1, r):
                c = h[:, t * cout:(t + 1) * cout]
                acc = (acc + c) if pool == 'avg' else jnp.maximum(acc, c)
            return acc / float(r) if pool == 'avg' else acc

        def vpu_matmul(h, wmat, cin):
            # Exact-f32 (B, cin) @ (cin, cout) as a VPU broadcast-MAC chain (no MXU).
            acc = h[:, 0:1] * wmat[0:1, :]
            for k in range(1, cin):
                acc = acc + h[:, k:k + 1] * wmat[k:k + 1, :]
            return acc

        def mixed_op(h, e, cin, cout):
            idx = aidx_ref[e]                            # GDAS-selected op (0..8)
            w_sc = ahw_ref[e * NUM_OPS + idx]            # hardwts[e, idx] (~= 1.0)
            # op index -> kind: 0 avg, 1 max, 2 relu, 3 sigmoid, 4 tanh, 5 none
            kind = jnp.where(idx <= 4, idx, jnp.where(idx <= 7, idx - 3, 5))
            # Pick the pre-packed weight slab (dense 0..2, group_dense 3..5) for
            # this edge; group_dense weights were block-diagonalized at init.
            slab = e * 6 + jnp.clip(idx - 2, 0, 5)
            wb = wb_ref[slab]                            # (cin_max + 1, c_half)
            wmat = wb[:cin, :cout]
            bvec = wb[cin_max:cin_max + 1, :cout]

            # All candidates stay in vregs; one shared MAC for the 3 dense kinds.
            pooled_avg = batch_norm(channel_pool(h, cin, cout, 'avg'))
            pooled_max = batch_norm(channel_pool(h, cin, cout, 'max'))
            y = vpu_matmul(h, wmat, cin) + bvec
            kv = jnp.full((batch, cout), kind, dtype=jnp.int32)
            dense = jnp.where(kv == 2, jnp.maximum(y, 0.0),
                    jnp.where(kv == 3, jax.nn.sigmoid(y), jnp.tanh(y)))
            res = jnp.where(kv == 0, pooled_avg,
                  jnp.where(kv == 1, pooled_max,
                  jnp.where(kv == 5, jnp.zeros_like(y), dense)))
            return w_sc * res

        def layer_act(y, row):
            li = lidx_ref[row]
            lw = lhw_ref[row * NUM_ACTS + li]
            lv = jnp.full(y.shape, li, dtype=jnp.int32)
            act = jnp.where(lv == 0, jnp.maximum(y, 0.0),
                  jnp.where(lv == 1, jax.nn.sigmoid(y),
                  jnp.where(lv == 2, jnp.tanh(y), y)))
            return lw * act

        x = x_ref[...]
        states = [x]
        for i in range(1, node_num + 1):
            acc = None
            for j in range(i):
                key = f"{j}->{i}"
                _, _, cin, cout = edges[key]
                y = mixed_op(states[j], edge2index[key], cin, cout)
                acc = y if acc is None else acc + y
            states.append(layer_act(acc / float(i), i - 1))

        state = states[1]
        for s in states[2:]:
            state = state + s
        state = layer_act(state / float(node_num), node_num)

        fin = fin_ref[...]                               # (c_half + 1, c_out)
        fw = fin[:c_half, :]
        fb = fin[c_half:c_half + 1, :]
        out_ref[...] = vpu_matmul(state, fw, c_half) + fb

    return kernel


# ----------------------------------------------------------------------------
# One-time packing of every edge's weights into a static slab stack
# ----------------------------------------------------------------------------
def pack_params(params, node_num, c_in, c_out):
    edge_keys, edges = _edge_structure(node_num, c_in)
    c_half = c_in // 2
    cin_max = c_in
    num_edges = len(edge_keys)
    # Slab layout per edge: [dense_relu, dense_sigmoid, dense_tanh,
    #                        group_relu, group_sigmoid, group_tanh]
    # Each slab: rows [0, cin) = weight, row cin_max = bias. Zero-padded.
    wb = jnp.zeros((num_edges * 6, cin_max + 1, c_half), jnp.float32)
    for e, ek in enumerate(edge_keys):
        _, _, cin, cout = edges[ek]
        wd, bd, wg, bg = params['edges'][ek]
        for s in range(3):
            wb = wb.at[e * 6 + s, :cin, :cout].set(wd[s])
            wb = wb.at[e * 6 + s, cin_max, :cout].set(bd[s, 0])
            wb = wb.at[e * 6 + 3 + s, :cin, :cout].set(wg[s])
            wb = wb.at[e * 6 + 3 + s, cin_max, :cout].set(bg[s, 0])
    final_wb = jnp.concatenate([params['final_w'], params['final_b']], axis=0)
    return {'wbstack': wb, 'final_wb': final_wb}


# ----------------------------------------------------------------------------
# Hot-path wrapper: only dtype casts / reshapes per call
# ----------------------------------------------------------------------------
@functools.partial(jax.jit, static_argnums=(6, 7, 8))
def pallas_forward(x, arch_hardwts, arch_index, layer_hardwts, layer_index,
                   packed, node_num, c_in, c_out):
    batch = x.shape[0]
    kernel = _make_kernel(node_num, c_in, c_out, batch)
    vmem = pl.BlockSpec(memory_space=pltpu.MemorySpace.VMEM)
    smem = pl.BlockSpec(memory_space=pltpu.MemorySpace.SMEM)
    # No grid: everything fits in a few vregs.  Scale-up plan in header comment.
    return pl.pallas_call(
        kernel,
        out_shape=jax.ShapeDtypeStruct((batch, c_out), jnp.float32),
        in_specs=[vmem, vmem, vmem, smem, smem, smem, smem],
        out_specs=vmem,
    )(x.astype(jnp.float32),
      packed['wbstack'], packed['final_wb'],
      arch_index.astype(jnp.int32), layer_index.astype(jnp.int32),
      arch_hardwts.astype(jnp.float32).reshape(-1),
      layer_hardwts.astype(jnp.float32).reshape(-1))


# ----------------------------------------------------------------------------
# Pure-JAX reference (true f32, uses concrete Python indices like `.item()`)
# ----------------------------------------------------------------------------
def reference_forward(x, arch_hardwts, arch_index, layer_hardwts, layer_index,
                      params, node_num, c_in, c_out):
    prec = jax.lax.Precision.HIGHEST
    edge_keys, edges = _edge_structure(node_num, c_in)
    edge2index = {k: i for i, k in enumerate(edge_keys)}
    batch = x.shape[0]
    acts = (jax.nn.relu, jax.nn.sigmoid, jnp.tanh)
    x = x.astype(jnp.float32)
    arch_index = [int(v) for v in arch_index]
    layer_index = [int(v) for v in layer_index]

    def batch_norm(y):
        mu = jnp.mean(y, axis=0, keepdims=True)
        var = jnp.mean((y - mu) ** 2, axis=0, keepdims=True)
        return (y - mu) * jax.lax.rsqrt(var + BN_EPS)

    def channel_pool(h, cin, cout, pool):
        if cin == cout:
            return h
        r = cin // cout
        chunks = [h[:, t * cout:(t + 1) * cout] for t in range(r)]
        acc = chunks[0]
        for c in chunks[1:]:
            acc = (acc + c) if pool == 'avg' else jnp.maximum(acc, c)
        return acc / float(r) if pool == 'avg' else acc

    def mixed_op(h, key):
        e = edge2index[key]
        _, _, cin, cout = edges[key]
        wd, bd, wg, bg = params['edges'][key]
        idx = arch_index[e]
        if idx == 0:
            y = batch_norm(channel_pool(h, cin, cout, 'avg'))
        elif idx == 1:
            y = batch_norm(channel_pool(h, cin, cout, 'max'))
        elif idx <= 4:
            k = idx - 2
            y = acts[k](jnp.dot(h, wd[k], preferred_element_type=jnp.float32,
                                precision=prec) + bd[k])
        elif idx <= 7:
            k = idx - 5
            y = acts[k](jnp.dot(h, wg[k], preferred_element_type=jnp.float32,
                                precision=prec) + bg[k])
        else:
            y = jnp.zeros((batch, cout), jnp.float32)
        return y * arch_hardwts[e, idx]

    def layer_act(y, row):
        fns = (jax.nn.relu, jax.nn.sigmoid, jnp.tanh, lambda v: v)
        idx = layer_index[row]
        return fns[idx](y) * layer_hardwts[row, idx]

    states = [x]
    for i in range(1, node_num + 1):
        acc = None
        for j in range(i):
            y = mixed_op(states[j], f"{j}->{i}")
            acc = y if acc is None else acc + y
        states.append(layer_act(acc / float(i), i - 1))
    state = states[1]
    for s in states[2:]:
        state = state + s
    state = layer_act(state / float(node_num), node_num)
    return jnp.dot(state, params['final_w'], preferred_element_type=jnp.float32,
                   precision=prec) + params['final_b']


# ----------------------------------------------------------------------------
# Gumbel sampling (glue, mirrors module.forward's get_gumbel_prob)
# ----------------------------------------------------------------------------
def get_gumbel_prob(key, xins, tau):
    # TODO(synk): the PyTorch retry-loop on inf/nan gumbel draws is omitted
    # (probability ~0 with float32 exponential sampling).
    gumbel = -jnp.log(jax.random.exponential(key, xins.shape, dtype=xins.dtype))
    logits = (jax.nn.log_softmax(xins, axis=1) + gumbel) / tau
    prob = jax.nn.softmax(logits, axis=1)
    index = jnp.argmax(prob, axis=-1)
    one_h = jax.nn.one_hot(index, xins.shape[1], dtype=xins.dtype)
    hardwts = one_h - jax.lax.stop_gradient(prob) + prob   # == one_h in value
    return hardwts, index


# ----------------------------------------------------------------------------
# Deterministic parameter construction (shapes from search_classifier.__init__)
# ----------------------------------------------------------------------------
def init_params(key, node_num, c_in, c_out):
    assert c_in % 4 == 0  # TODO(synk): preprocess0 (ReLUConvBN) branch for C_in % 4 != 0 not implemented
    edge_keys, edges = _edge_structure(node_num, c_in)
    c_half = c_in // 2
    key, k_arch, k_layer, k_fw, k_fb = jax.random.split(key, 5)
    params = {
        'arch': jax.random.normal(k_arch, (len(edge_keys), NUM_OPS), jnp.float32),
        'layer': jax.random.normal(k_layer, (node_num + 1, NUM_ACTS), jnp.float32),
        'edges': {},
        'final_w': jax.random.normal(k_fw, (c_half, c_out), jnp.float32) / jnp.sqrt(c_half),
        'final_b': jax.random.normal(k_fb, (1, c_out), jnp.float32) * 0.1,
    }
    for ek in edge_keys:
        _, _, cin, cout = edges[ek]
        key, kd, kdb, kg, kgb = jax.random.split(key, 5)
        wd = jax.random.normal(kd, (3, cin, cout), jnp.float32) / jnp.sqrt(cin)
        bd = jax.random.normal(kdb, (3, 1, cout), jnp.float32) * 0.1
        gi, go = cin // 4, cout // 4
        blocks = jax.random.normal(kg, (3, 4, gi, go), jnp.float32) / jnp.sqrt(max(gi, 1))
        wg = jnp.zeros((3, cin, cout), jnp.float32)
        for g in range(4):   # group_dense_4 == block-diagonal full matrix
            wg = wg.at[:, g * gi:(g + 1) * gi, g * go:(g + 1) * go].set(blocks[:, g])
        bg = jax.random.normal(kgb, (3, 1, cout), jnp.float32) * 0.1
        params['edges'][ek] = (wd, bd, wg, bg)
    return params


if __name__ == "__main__":
    NODE_NUM = 2
    IN_NUM = 2      # unused by the forward pass (genotype-only), kept for parity
    C_IN = 8        # divisible by 4 -> no preprocess0
    C_OUT = 4
    BATCH = 2
    TAU = 10.0

    root = jax.random.PRNGKey(0)
    k_params, k_x, k_g1, k_g2 = jax.random.split(root, 4)

    params = init_params(k_params, NODE_NUM, C_IN, C_OUT)
    packed = pack_params(params, NODE_NUM, C_IN, C_OUT)   # one-time, off the hot path
    x = jax.random.normal(k_x, (BATCH, C_IN), jnp.float32)   # module reshapes to (B, C, 1, 1)

    arch_hardwts, arch_index = get_gumbel_prob(k_g1, params['arch'], TAU)
    layer_hardwts, layer_index = get_gumbel_prob(k_g2, params['layer'], TAU)

    out = pallas_forward(x, arch_hardwts, arch_index, layer_hardwts, layer_index,
                         packed, NODE_NUM, C_IN, C_OUT)
    out = jax.block_until_ready(out)

    ref = reference_forward(x, arch_hardwts, arch_index, layer_hardwts, layer_index,
                            params, NODE_NUM, C_IN, C_OUT)
    assert out.shape == (BATCH, C_OUT)
    assert jnp.allclose(out, ref, atol=2e-3, rtol=2e-3), "Pallas kernel mismatch vs JAX reference"
    print("KERNEL_OK")
</pallas_src>

<mosaic_0001>
module attributes {stable_mosaic.version = 11 : i64} {
  func.func @kernel(%arg0: memref<2x8xf32, #tpu.memory_space<vmem>>, %arg1: memref<18x9x4xf32, #tpu.memory_space<vmem>>, %arg2: memref<5x4xf32, #tpu.memory_space<vmem>>, %arg3: memref<3xi32, #tpu.memory_space<smem>>, %arg4: memref<3xi32, #tpu.memory_space<smem>>, %arg5: memref<27xf32, #tpu.memory_space<smem>>, %arg6: memref<12xf32, #tpu.memory_space<smem>>, %arg7: memref<2x4xf32, #tpu.memory_space<vmem>>) attributes {dimension_semantics = [], scalar_prefetch = 0 : i64, scratch_operands = 0 : i64, tpu.core_type = #tpu.core_type<tc>} {
    %c0 = arith.constant 0 : index
    %c0_0 = arith.constant 0 : index
    %0 = vector.load %arg0[%c0, %c0_0] : memref<2x8xf32, #tpu.memory_space<vmem>>, vector<2x8xf32>
    %c0_1 = arith.constant 0 : index
    %1 = memref.load %arg3[%c0_1] : memref<3xi32, #tpu.memory_space<smem>>
    %c0_i32 = arith.constant 0 : i32
    %2 = arith.addi %c0_i32, %1 : i32
    %3 = arith.index_cast %2 : i32 to index
    %4 = memref.load %arg5[%3] : memref<27xf32, #tpu.memory_space<smem>>
    %c4_i32 = arith.constant 4 : i32
    %5 = arith.cmpi sle, %1, %c4_i32 : i32
    %c7_i32 = arith.constant 7 : i32
    %6 = arith.cmpi sle, %1, %c7_i32 : i32
    %c3_i32 = arith.constant 3 : i32
    %7 = arith.subi %1, %c3_i32 : i32
    %c5_i32 = arith.constant 5 : i32
    %8 = arith.select %6, %7, %c5_i32 : i32
    %9 = arith.select %5, %1, %8 : i32
    %c2_i32 = arith.constant 2 : i32
    %10 = arith.subi %1, %c2_i32 : i32
    %c0_i32_2 = arith.constant 0 : i32
    %c5_i32_3 = arith.constant 5 : i32
    %11 = arith.maxsi %c0_i32_2, %10 : i32
    %12 = arith.minsi %c5_i32_3, %11 : i32
    %c0_i32_4 = arith.constant 0 : i32
    %13 = arith.addi %c0_i32_4, %12 : i32
    %14 = arith.index_cast %13 : i32 to index
    %c0_5 = arith.constant 0 : index
    %c0_6 = arith.constant 0 : index
    %15 = vector.load %arg1[%14, %c0_5, %c0_6] : memref<18x9x4xf32, #tpu.memory_space<vmem>>, vector<1x9x4xf32>
    %16 = vector.shape_cast %15 : vector<1x9x4xf32> to vector<9x4xf32>
    %17 = vector.extract_strided_slice %16 {offsets = [0, 0], sizes = [8, 4], strides = [1, 1]} : vector<9x4xf32> to vector<8x4xf32>
    %18 = vector.extract_strided_slice %16 {offsets = [8, 0], sizes = [1, 4], strides = [1, 1]} : vector<9x4xf32> to vector<1x4xf32>
    %19 = vector.extract_strided_slice %0 {offsets = [0, 0], sizes = [2, 4], strides = [1, 1]} : vector<2x8xf32> to vector<2x4xf32>
    %20 = vector.extract_strided_slice %0 {offsets = [0, 4], sizes = [2, 4], strides = [1, 1]} : vector<2x8xf32> to vector<2x4xf32>
    %21 = arith.addf %19, %20 : vector<2x4xf32>
    %cst = arith.constant 2.000000e+00 : f32
    %22 = vector.broadcast %cst : f32 to vector<2x4xf32>
    %23 = arith.divf %21, %22 : vector<2x4xf32>
    %cst_7 = arith.constant dense<0.000000e+00> : vector<4xf32>
    %24 = vector.multi_reduction <add>, %23, %cst_7 [0] : vector<2x4xf32> to vector<4xf32>
    %25 = vector.shape_cast %24 : vector<4xf32> to vector<1x4xf32>
    %cst_8 = arith.constant 2.000000e+00 : f32
    %26 = vector.broadcast %cst_8 : f32 to vector<1x4xf32>
    %27 = arith.divf %25, %26 : vector<1x4xf32>
    %28 = vector.broadcast %27 : vector<1x4xf32> to vector<2x4xf32>
    %29 = arith.subf %23, %28 : vector<2x4xf32>
    %30 = arith.mulf %29, %29 : vector<2x4xf32>
    %cst_9 = arith.constant dense<0.000000e+00> : vector<4xf32>
    %31 = vector.multi_reduction <add>, %30, %cst_9 [0] : vector<2x4xf32> to vector<4xf32>
    %32 = vector.shape_cast %31 : vector<4xf32> to vector<1x4xf32>
    %cst_10 = arith.constant 2.000000e+00 : f32
    %33 = vector.broadcast %cst_10 : f32 to vector<1x4xf32>
    %34 = arith.divf %32, %33 : vector<1x4xf32>
    %35 = vector.broadcast %27 : vector<1x4xf32> to vector<2x4xf32>
    %36 = arith.subf %23, %35 : vector<2x4xf32>
    %cst_11 = arith.constant 9.99999974E-6 : f32
    %37 = vector.broadcast %cst_11 : f32 to vector<1x4xf32>
    %38 = arith.addf %34, %37 : vector<1x4xf32>
    %39 = math.rsqrt %38 : vector<1x4xf32>
    %40 = vector.broadcast %39 : vector<1x4xf32> to vector<2x4xf32>
    %41 = arith.mulf %36, %40 : vector<2x4xf32>
    %42 = vector.extract_strided_slice %0 {offsets = [0, 0], sizes = [2, 4], strides = [1, 1]} : vector<2x8xf32> to vector<2x4xf32>
    %43 = vector.extract_strided_slice %0 {offsets = [0, 4], sizes = [2, 4], strides = [1, 1]} : vector<2x8xf32> to vector<2x4xf32>
    %44 = arith.maximumf %42, %43 : vector<2x4xf32>
    %cst_12 = arith.constant dense<0.000000e+00> : vector<4xf32>
    %45 = vector.multi_reduction <add>, %44, %cst_12 [0] : vector<2x4xf32> to vector<4xf32>
    %46 = vector.shape_cast %45 : vector<4xf32> to vector<1x4xf32>
    %cst_13 = arith.constant 2.000000e+00 : f32
    %47 = vector.broadcast %cst_13 : f32 to vector<1x4xf32>
    %48 = arith.divf %46, %47 : vector<1x4xf32>
    %49 = vector.broadcast %48 : vector<1x4xf32> to vector<2x4xf32>
    %50 = arith.subf %44, %49 : vector<2x4xf32>
    %51 = arith.mulf %50, %50 : vector<2x4xf32>
    %cst_14 = arith.constant dense<0.000000e+00> : vector<4xf32>
    %52 = vector.multi_reduction <add>, %51, %cst_14 [0] : vector<2x4xf32> to vector<4xf32>
    %53 = vector.shape_cast %52 : vector<4xf32> to vector<1x4xf32>
    %cst_15 = arith.constant 2.000000e+00 : f32
    %54 = vector.broadcast %cst_15 : f32 to vector<1x4xf32>
    %55 = arith.divf %53, %54 : vector<1x4xf32>
    %56 = vector.broadcast %48 : vector<1x4xf32> to vector<2x4xf32>
    %57 = arith.subf %44, %56 : vector<2x4xf32>
    %cst_16 = arith.constant 9.99999974E-6 : f32
    %58 = vector.broadcast %cst_16 : f32 to vector<1x4xf32>
    %59 = arith.addf %55, %58 : vector<1x4xf32>
    %60 = math.rsqrt %59 : vector<1x4xf32>
    %61 = vector.broadcast %60 : vector<1x4xf32> to vector<2x4xf32>
    %62 = arith.mulf %57, %61 : vector<2x4xf32>
    %63 = vector.extract_strided_slice %0 {offsets = [0, 0], sizes = [2, 1], strides = [1, 1]} : vector<2x8xf32> to vector<2x1xf32>
    %64 = vector.extract_strided_slice %17 {offsets = [0, 0], sizes = [1, 4], strides = [1, 1]} : vector<8x4xf32> to vector<1x4xf32>
    %65 = vector.broadcast %63 : vector<2x1xf32> to vector<2x4xf32>
    %66 = vector.broadcast %64 : vector<1x4xf32> to vector<2x4xf32>
    %67 = arith.mulf %65, %66 : vector<2x4xf32>
    %68 = vector.extract_strided_slice %0 {offsets = [0, 1], sizes = [2, 1], strides = [1, 1]} : vector<2x8xf32> to vector<2x1xf32>
    %69 = vector.extract_strided_slice %17 {offsets = [1, 0], sizes = [1, 4], strides = [1, 1]} : vector<8x4xf32> to vector<1x4xf32>
    %70 = vector.broadcast %68 : vector<2x1xf32> to vector<2x4xf32>
    %71 = vector.broadcast %69 : vector<1x4xf32> to vector<2x4xf32>
    %72 = arith.mulf %70, %71 : vector<2x4xf32>
    %73 = arith.addf %67, %72 : vector<2x4xf32>
    %74 = vector.extract_strided_slice %0 {offsets = [0, 2], sizes = [2, 1], strides = [1, 1]} : vector<2x8xf32> to vector<2x1xf32>
    %75 = vector.extract_strided_slice %17 {offsets = [2, 0], sizes = [1, 4], strides = [1, 1]} : vector<8x4xf32> to vector<1x4xf32>
    %76 = vector.broadcast %74 : vector<2x1xf32> to vector<2x4xf32>
    %77 = vector.broadcast %75 : vector<1x4xf32> to vector<2x4xf32>
    %78 = arith.mulf %76, %77 : vector<2x4xf32>
    %79 = arith.addf %73, %78 : vector<2x4xf32>
    %80 = vector.extract_strided_slice %0 {offsets = [0, 3], sizes = [2, 1], strides = [1, 1]} : vector<2x8xf32> to vector<2x1xf32>
    %81 = vector.extract_strided_slice %17 {offsets = [3, 0], sizes = [1, 4], strides = [1, 1]} : vector<8x4xf32> to vector<1x4xf32>
    %82 = vector.broadcast %80 : vector<2x1xf32> to vector<2x4xf32>
    %83 = vector.broadcast %81 : vector<1x4xf32> to vector<2x4xf32>
    %84 = arith.mulf %82, %83 : vector<2x4xf32>
    %85 = arith.addf %79, %84 : vector<2x4xf32>
    %86 = vector.extract_strided_slice %0 {offsets = [0, 4], sizes = [2, 1], strides = [1, 1]} : vector<2x8xf32> to vector<2x1xf32>
    %87 = vector.extract_strided_slice %17 {offsets = [4, 0], sizes = [1, 4], strides = [1, 1]} : vector<8x4xf32> to vector<1x4xf32>
    %88 = vector.broadcast %86 : vector<2x1xf32> to vector<2x4xf32>
    %89 = vector.broadcast %87 : vector<1x4xf32> to vector<2x4xf32>
    %90 = arith.mulf %88, %89 : vector<2x4xf32>
    %91 = arith.addf %85, %90 : vector<2x4xf32>
    %92 = vector.extract_strided_slice %0 {offsets = [0, 5], sizes = [2, 1], strides = [1, 1]} : vector<2x8xf32> to vector<2x1xf32>
    %93 = vector.extract_strided_slice %17 {offsets = [5, 0], sizes = [1, 4], strides = [1, 1]} : vector<8x4xf32> to vector<1x4xf32>
    %94 = vector.broadcast %92 : vector<2x1xf32> to vector<2x4xf32>
    %95 = vector.broadcast %93 : vector<1x4xf32> to vector<2x4xf32>
    %96 = arith.mulf %94, %95 : vector<2x4xf32>
    %97 = arith.addf %91, %96 : vector<2x4xf32>
    %98 = vector.extract_strided_slice %0 {offsets = [0, 6], sizes = [2, 1], strides = [1, 1]} : vector<2x8xf32> to vector<2x1xf32>
    %99 = vector.extract_strided_slice %17 {offsets = [6, 0], sizes = [1, 4], strides = [1, 1]} : vector<8x4xf32> to vector<1x4xf32>
    %100 = vector.broadcast %98 : vector<2x1xf32> to vector<2x4xf32>
    %101 = vector.broadcast %99 : vector<1x4xf32> to vector<2x4xf32>
    %102 = arith.mulf %100, %101 : vector<2x4xf32>
    %103 = arith.addf %97, %102 : vector<2x4xf32>
    %104 = vector.extract_strided_slice %0 {offsets = [0, 7], sizes = [2, 1], strides = [1, 1]} : vector<2x8xf32> to vector<2x1xf32>
    %105 = vector.extract_strided_slice %17 {offsets = [7, 0], sizes = [1, 4], strides = [1, 1]} : vector<8x4xf32> to vector<1x4xf32>
    %106 = vector.broadcast %104 : vector<2x1xf32> to vector<2x4xf32>
    %107 = vector.broadcast %105 : vector<1x4xf32> to vector<2x4xf32>
    %108 = arith.mulf %106, %107 : vector<2x4xf32>
    %109 = arith.addf %103, %108 : vector<2x4xf32>
    %110 = vector.broadcast %18 : vector<1x4xf32> to vector<2x4xf32>
    %111 = arith.addf %109, %110 : vector<2x4xf32>
    %112 = vector.broadcast %9 : i32 to vector<2x4xi32>
    %c2_i32_17 = arith.constant 2 : i32
    %113 = vector.broadcast %c2_i32_17 : i32 to vector<2x4xi32>
    %114 = arith.cmpi eq, %112, %113 : vector<2x4xi32>
    %cst_18 = arith.constant 0.000000e+00 : f32
    %115 = vector.broadcast %cst_18 : f32 to vector<2x4xf32>
    %116 = arith.maximumf %111, %115 : vector<2x4xf32>
    %c3_i32_19 = arith.constant 3 : i32
    %117 = vector.broadcast %c3_i32_19 : i32 to vector<2x4xi32>
    %118 = arith.cmpi eq, %112, %117 : vector<2x4xi32>
    %119 = arith.negf %111 : vector<2x4xf32>
    %120 = math.exp %119 : vector<2x4xf32>
    %cst_20 = arith.constant 1.000000e+00 : f32
    %121 = vector.broadcast %cst_20 : f32 to vector<2x4xf32>
    %122 = arith.addf %121, %120 : vector<2x4xf32>
    %123 = arith.divf %121, %122 : vector<2x4xf32>
    %124 = math.tanh %111 : vector<2x4xf32>
    %125 = arith.select %118, %123, %124 : vector<2x4xi1>, vector<2x4xf32>
    %126 = arith.select %114, %116, %125 : vector<2x4xi1>, vector<2x4xf32>
    %c0_i32_21 = arith.constant 0 : i32
    %127 = vector.broadcast %c0_i32_21 : i32 to vector<2x4xi32>
    %128 = arith.cmpi eq, %112, %127 : vector<2x4xi32>
    %c1_i32 = arith.constant 1 : i32
    %129 = vector.broadcast %c1_i32 : i32 to vector<2x4xi32>
    %130 = arith.cmpi eq, %112, %129 : vector<2x4xi32>
    %c5_i32_22 = arith.constant 5 : i32
    %131 = vector.broadcast %c5_i32_22 : i32 to vector<2x4xi32>
    %132 = arith.cmpi eq, %112, %131 : vector<2x4xi32>
    %cst_23 = arith.constant 0.000000e+00 : f32
    %133 = vector.broadcast %cst_23 : f32 to vector<2x4xf32>
    %134 = arith.select %132, %133, %126 : vector<2x4xi1>, vector<2x4xf32>
    %135 = arith.select %130, %62, %134 : vector<2x4xi1>, vector<2x4xf32>
    %136 = arith.select %128, %41, %135 : vector<2x4xi1>, vector<2x4xf32>
    %137 = vector.broadcast %4 : f32 to vector<2x4xf32>
    %138 = arith.mulf %137, %136 : vector<2x4xf32>
    %cst_24 = arith.constant 1.000000e+00 : f32
    %139 = vector.broadcast %cst_24 : f32 to vector<2x4xf32>
    %140 = arith.divf %138, %139 : vector<2x4xf32>
    %c0_25 = arith.constant 0 : index
    %141 = memref.load %arg4[%c0_25] : memref<3xi32, #tpu.memory_space<smem>>
    %c0_i32_26 = arith.constant 0 : i32
    %142 = arith.addi %c0_i32_26, %141 : i32
    %143 = arith.index_cast %142 : i32 to index
    %144 = memref.load %arg6[%143] : memref<12xf32, #tpu.memory_space<smem>>
    %145 = vector.broadcast %141 : i32 to vector<2x4xi32>
    %c0_i32_27 = arith.constant 0 : i32
    %146 = vector.broadcast %c0_i32_27 : i32 to vector<2x4xi32>
    %147 = arith.cmpi eq, %145, %146 : vector<2x4xi32>
    %cst_28 = arith.constant 0.000000e+00 : f32
    %148 = vector.broadcast %cst_28 : f32 to vector<2x4xf32>
    %149 = arith.maximumf %140, %148 : vector<2x4xf32>
    %c1_i32_29 = arith.constant 1 : i32
    %150 = vector.broadcast %c1_i32_29 : i32 to vector<2x4xi32>
    %151 = arith.cmpi eq, %145, %150 : vector<2x4xi32>
    %152 = arith.negf %140 : vector<2x4xf32>
    %153 = math.exp %152 : vector<2x4xf32>
    %cst_30 = arith.constant 1.000000e+00 : f32
    %154 = vector.broadcast %cst_30 : f32 to vector<2x4xf32>
    %155 = arith.addf %154, %153 : vector<2x4xf32>
    %156 = arith.divf %154, %155 : vector<2x4xf32>
    %c2_i32_31 = arith.constant 2 : i32
    %157 = vector.broadcast %c2_i32_31 : i32 to vector<2x4xi32>
    %158 = arith.cmpi eq, %145, %157 : vector<2x4xi32>
    %159 = math.tanh %140 : vector<2x4xf32>
    %160 = arith.select %158, %159, %140 : vector<2x4xi1>, vector<2x4xf32>
    %161 = arith.select %151, %156, %160 : vector<2x4xi1>, vector<2x4xf32>
    %162 = arith.select %147, %149, %161 : vector<2x4xi1>, vector<2x4xf32>
    %163 = vector.broadcast %144 : f32 to vector<2x4xf32>
    %164 = arith.mulf %163, %162 : vector<2x4xf32>
    %c1 = arith.constant 1 : index
    %165 = memref.load %arg3[%c1] : memref<3xi32, #tpu.memory_space<smem>>
    %c9_i32 = arith.constant 9 : i32
    %166 = arith.addi %c9_i32, %165 : i32
    %167 = arith.index_cast %166 : i32 to index
    %168 = memref.load %arg5[%167] : memref<27xf32, #tpu.memory_space<smem>>
    %c4_i32_32 = arith.constant 4 : i32
    %169 = arith.cmpi sle, %165, %c4_i32_32 : i32
    %c7_i32_33 = arith.constant 7 : i32
    %170 = arith.cmpi sle, %165, %c7_i32_33 : i32
    %c3_i32_34 = arith.constant 3 : i32
    %171 = arith.subi %165, %c3_i32_34 : i32
    %c5_i32_35 = arith.constant 5 : i32
    %172 = arith.select %170, %171, %c5_i32_35 : i32
    %173 = arith.select %169, %165, %172 : i32
    %c2_i32_36 = arith.constant 2 : i32
    %174 = arith.subi %165, %c2_i32_36 : i32
    %c0_i32_37 = arith.constant 0 : i32
    %c5_i32_38 = arith.constant 5 : i32
    %175 = arith.maxsi %c0_i32_37, %174 : i32
    %176 = arith.minsi %c5_i32_38, %175 : i32
    %c6_i32 = arith.constant 6 : i32
    %177 = arith.addi %c6_i32, %176 : i32
    %178 = arith.index_cast %177 : i32 to index
    %c0_39 = arith.constant 0 : index
    %c0_40 = arith.constant 0 : index
    %179 = vector.load %arg1[%178, %c0_39, %c0_40] : memref<18x9x4xf32, #tpu.memory_space<vmem>>, vector<1x9x4xf32>
    %180 = vector.shape_cast %179 : vector<1x9x4xf32> to vector<9x4xf32>
    %181 = vector.extract_strided_slice %180 {offsets = [0, 0], sizes = [8, 4], strides = [1, 1]} : vector<9x4xf32> to vector<8x4xf32>
    %182 = vector.extract_strided_slice %180 {offsets = [8, 0], sizes = [1, 4], strides = [1, 1]} : vector<9x4xf32> to vector<1x4xf32>
    %183 = vector.extract_strided_slice %0 {offsets = [0, 0], sizes = [2, 4], strides = [1, 1]} : vector<2x8xf32> to vector<2x4xf32>
    %184 = vector.extract_strided_slice %0 {offsets = [0, 4], sizes = [2, 4], strides = [1, 1]} : vector<2x8xf32> to vector<2x4xf32>
    %185 = arith.addf %183, %184 : vector<2x4xf32>
    %cst_41 = arith.constant 2.000000e+00 : f32
    %186 = vector.broadcast %cst_41 : f32 to vector<2x4xf32>
    %187 = arith.divf %185, %186 : vector<2x4xf32>
    %cst_42 = arith.constant dense<0.000000e+00> : vector<4xf32>
    %188 = vector.multi_reduction <add>, %187, %cst_42 [0] : vector<2x4xf32> to vector<4xf32>
    %189 = vector.shape_cast %188 : vector<4xf32> to vector<1x4xf32>
    %cst_43 = arith.constant 2.000000e+00 : f32
    %190 = vector.broadcast %cst_43 : f32 to vector<1x4xf32>
    %191 = arith.divf %189, %190 : vector<1x4xf32>
    %192 = vector.broadcast %191 : vector<1x4xf32> to vector<2x4xf32>
    %193 = arith.subf %187, %192 : vector<2x4xf32>
    %194 = arith.mulf %193, %193 : vector<2x4xf32>
    %cst_44 = arith.constant dense<0.000000e+00> : vector<4xf32>
    %195 = vector.multi_reduction <add>, %194, %cst_44 [0] : vector<2x4xf32> to vector<4xf32>
    %196 = vector.shape_cast %195 : vector<4xf32> to vector<1x4xf32>
    %cst_45 = arith.constant 2.000000e+00 : f32
    %197 = vector.broadcast %cst_45 : f32 to vector<1x4xf32>
    %198 = arith.divf %196, %197 : vector<1x4xf32>
    %199 = vector.broadcast %191 : vector<1x4xf32> to vector<2x4xf32>
    %200 = arith.subf %187, %199 : vector<2x4xf32>
    %cst_46 = arith.constant 9.99999974E-6 : f32
    %201 = vector.broadcast %cst_46 : f32 to vector<1x4xf32>
    %202 = arith.addf %198, %201 : vector<1x4xf32>
    %203 = math.rsqrt %202 : vector<1x4xf32>
    %204 = vector.broadcast %203 : vector<1x4xf32> to vector<2x4xf32>
    %205 = arith.mulf %200, %204 : vector<2x4xf32>
    %206 = vector.extract_strided_slice %0 {offsets = [0, 0], sizes = [2, 4], strides = [1, 1]} : vector<2x8xf32> to vector<2x4xf32>
    %207 = vector.extract_strided_slice %0 {offsets = [0, 4], sizes = [2, 4], strides = [1, 1]} : vector<2x8xf32> to vector<2x4xf32>
    %208 = arith.maximumf %206, %207 : vector<2x4xf32>
    %cst_47 = arith.constant dense<0.000000e+00> : vector<4xf32>
    %209 = vector.multi_reduction <add>, %208, %cst_47 [0] : vector<2x4xf32> to vector<4xf32>
    %210 = vector.shape_cast %209 : vector<4xf32> to vector<1x4xf32>
    %cst_48 = arith.constant 2.000000e+00 : f32
    %211 = vector.broadcast %cst_48 : f32 to vector<1x4xf32>
    %212 = arith.divf %210, %211 : vector<1x4xf32>
    %213 = vector.broadcast %212 : vector<1x4xf32> to vector<2x4xf32>
    %214 = arith.subf %208, %213 : vector<2x4xf32>
    %215 = arith.mulf %214, %214 : vector<2x4xf32>
    %cst_49 = arith.constant dense<0.000000e+00> : vector<4xf32>
    %216 = vector.multi_reduction <add>, %215, %cst_49 [0] : vector<2x4xf32> to vector<4xf32>
    %217 = vector.shape_cast %216 : vector<4xf32> to vector<1x4xf32>
    %cst_50 = arith.constant 2.000000e+00 : f32
    %218 = vector.broadcast %cst_50 : f32 to vector<1x4xf32>
    %219 = arith.divf %217, %218 : vector<1x4xf32>
    %220 = vector.broadcast %212 : vector<1x4xf32> to vector<2x4xf32>
    %221 = arith.subf %208, %220 : vector<2x4xf32>
    %cst_51 = arith.constant 9.99999974E-6 : f32
    %222 = vector.broadcast %cst_51 : f32 to vector<1x4xf32>
    %223 = arith.addf %219, %222 : vector<1x4xf32>
    %224 = math.rsqrt %223 : vector<1x4xf32>
    %225 = vector.broadcast %224 : vector<1x4xf32> to vector<2x4xf32>
    %226 = arith.mulf %221, %225 : vector<2x4xf32>
    %227 = vector.extract_strided_slice %0 {offsets = [0, 0], sizes = [2, 1], strides = [1, 1]} : vector<2x8xf32> to vector<2x1xf32>
    %228 = vector.extract_strided_slice %181 {offsets = [0, 0], sizes = [1, 4], strides = [1, 1]} : vector<8x4xf32> to vector<1x4xf32>
    %229 = vector.broadcast %227 : vector<2x1xf32> to vector<2x4xf32>
    %230 = vector.broadcast %228 : vector<1x4xf32> to vector<2x4xf32>
    %231 = arith.mulf %229, %230 : vector<2x4xf32>
    %232 = vector.extract_strided_slice %0 {offsets = [0, 1], sizes = [2, 1], strides = [1, 1]} : vector<2x8xf32> to vector<2x1xf32>
    %233 = vector.extract_strided_slice %181 {offsets = [1, 0], sizes = [1, 4], strides = [1, 1]} : vector<8x4xf32> to vector<1x4xf32>
    %234 = vector.broadcast %232 : vector<2x1xf32> to vector<2x4xf32>
    %235 = vector.broadcast %233 : vector<1x4xf32> to vector<2x4xf32>
    %236 = arith.mulf %234, %235 : vector<2x4xf32>
    %237 = arith.addf %231, %236 : vector<2x4xf32>
    %238 = vector.extract_strided_slice %0 {offsets = [0, 2], sizes = [2, 1], strides = [1, 1]} : vector<2x8xf32> to vector<2x1xf32>
    %239 = vector.extract_strided_slice %181 {offsets = [2, 0], sizes = [1, 4], strides = [1, 1]} : vector<8x4xf32> to vector<1x4xf32>
    %240 = vector.broadcast %238 : vector<2x1xf32> to vector<2x4xf32>
    %241 = vector.broadcast %239 : vector<1x4xf32> to vector<2x4xf32>
    %242 = arith.mulf %240, %241 : vector<2x4xf32>
    %243 = arith.addf %237, %242 : vector<2x4xf32>
    %244 = vector.extract_strided_slice %0 {offsets = [0, 3], sizes = [2, 1], strides = [1, 1]} : vector<2x8xf32> to vector<2x1xf32>
    %245 = vector.extract_strided_slice %181 {offsets = [3, 0], sizes = [1, 4], strides = [1, 1]} : vector<8x4xf32> to vector<1x4xf32>
    %246 = vector.broadcast %244 : vector<2x1xf32> to vector<2x4xf32>
    %247 = vector.broadcast %245 : vector<1x4xf32> to vector<2x4xf32>
    %248 = arith.mulf %246, %247 : vector<2x4xf32>
    %249 = arith.addf %243, %248 : vector<2x4xf32>
    %250 = vector.extract_strided_slice %0 {offsets = [0, 4], sizes = [2, 1], strides = [1, 1]} : vector<2x8xf32> to vector<2x1xf32>
    %251 = vector.extract_strided_slice %181 {offsets = [4, 0], sizes = [1, 4], strides = [1, 1]} : vector<8x4xf32> to vector<1x4xf32>
    %252 = vector.broadcast %250 : vector<2x1xf32> to vector<2x4xf32>
    %253 = vector.broadcast %251 : vector<1x4xf32> to vector<2x4xf32>
    %254 = arith.mulf %252, %253 : vector<2x4xf32>
    %255 = arith.addf %249, %254 : vector<2x4xf32>
    %256 = vector.extract_strided_slice %0 {offsets = [0, 5], sizes = [2, 1], strides = [1, 1]} : vector<2x8xf32> to vector<2x1xf32>
    %257 = vector.extract_strided_slice %181 {offsets = [5, 0], sizes = [1, 4], strides = [1, 1]} : vector<8x4xf32> to vector<1x4xf32>
    %258 = vector.broadcast %256 : vector<2x1xf32> to vector<2x4xf32>
    %259 = vector.broadcast %257 : vector<1x4xf32> to vector<2x4xf32>
    %260 = arith.mulf %258, %259 : vector<2x4xf32>
    %261 = arith.addf %255, %260 : vector<2x4xf32>
    %262 = vector.extract_strided_slice %0 {offsets = [0, 6], sizes = [2, 1], strides = [1, 1]} : vector<2x8xf32> to vector<2x1xf32>
    %263 = vector.extract_strided_slice %181 {offsets = [6, 0], sizes = [1, 4], strides = [1, 1]} : vector<8x4xf32> to vector<1x4xf32>
    %264 = vector.broadcast %262 : vector<2x1xf32> to vector<2x4xf32>
    %265 = vector.broadcast %263 : vector<1x4xf32> to vector<2x4xf32>
    %266 = arith.mulf %264, %265 : vector<2x4xf32>
    %267 = arith.addf %261, %266 : vector<2x4xf32>
    %268 = vector.extract_strided_slice %0 {offsets = [0, 7], sizes = [2, 1], strides = [1, 1]} : vector<2x8xf32> to vector<2x1xf32>
    %269 = vector.extract_strided_slice %181 {offsets = [7, 0], sizes = [1, 4], strides = [1, 1]} : vector<8x4xf32> to vector<1x4xf32>
    %270 = vector.broadcast %268 : vector<2x1xf32> to vector<2x4xf32>
    %271 = vector.broadcast %269 : vector<1x4xf32> to vector<2x4xf32>
    %272 = arith.mulf %270, %271 : vector<2x4xf32>
    %273 = arith.addf %267, %272 : vector<2x4xf32>
    %274 = vector.broadcast %182 : vector<1x4xf32> to vector<2x4xf32>
    %275 = arith.addf %273, %274 : vector<2x4xf32>
    %276 = vector.broadcast %173 : i32 to vector<2x4xi32>
    %c2_i32_52 = arith.constant 2 : i32
    %277 = vector.broadcast %c2_i32_52 : i32 to vector<2x4xi32>
    %278 = arith.cmpi eq, %276, %277 : vector<2x4xi32>
    %cst_53 = arith.constant 0.000000e+00 : f32
    %279 = vector.broadcast %cst_53 : f32 to vector<2x4xf32>
    %280 = arith.maximumf %275, %279 : vector<2x4xf32>
    %c3_i32_54 = arith.constant 3 : i32
    %281 = vector.broadcast %c3_i32_54 : i32 to vector<2x4xi32>
    %282 = arith.cmpi eq, %276, %281 : vector<2x4xi32>
    %283 = arith.negf %275 : vector<2x4xf32>
    %284 = math.exp %283 : vector<2x4xf32>
    %cst_55 = arith.constant 1.000000e+00 : f32
    %285 = vector.broadcast %cst_55 : f32 to vector<2x4xf32>
    %286 = arith.addf %285, %284 : vector<2x4xf32>
    %287 = arith.divf %285, %286 : vector<2x4xf32>
    %288 = math.tanh %275 : vector<2x4xf32>
    %289 = arith.select %282, %287, %288 : vector<2x4xi1>, vector<2x4xf32>
    %290 = arith.select %278, %280, %289 : vector<2x4xi1>, vector<2x4xf32>
    %c0_i32_56 = arith.constant 0 : i32
    %291 = vector.broadcast %c0_i32_56 : i32 to vector<2x4xi32>
    %292 = arith.cmpi eq, %276, %291 : vector<2x4xi32>
    %c1_i32_57 = arith.constant 1 : i32
    %293 = vector.broadcast %c1_i32_57 : i32 to vector<2x4xi32>
    %294 = arith.cmpi eq, %276, %293 : vector<2x4xi32>
    %c5_i32_58 = arith.constant 5 : i32
    %295 = vector.broadcast %c5_i32_58 : i32 to vector<2x4xi32>
    %296 = arith.cmpi eq, %276, %295 : vector<2x4xi32>
    %cst_59 = arith.constant 0.000000e+00 : f32
    %297 = vector.broadcast %cst_59 : f32 to vector<2x4xf32>
    %298 = arith.select %296, %297, %290 : vector<2x4xi1>, vector<2x4xf32>
    %299 = arith.select %294, %226, %298 : vector<2x4xi1>, vector<2x4xf32>
    %300 = arith.select %292, %205, %299 : vector<2x4xi1>, vector<2x4xf32>
    %301 = vector.broadcast %168 : f32 to vector<2x4xf32>
    %302 = arith.mulf %301, %300 : vector<2x4xf32>
    %c2 = arith.constant 2 : index
    %303 = memref.load %arg3[%c2] : memref<3xi32, #tpu.memory_space<smem>>
    %c18_i32 = arith.constant 18 : i32
    %304 = arith.addi %c18_i32, %303 : i32
    %305 = arith.index_cast %304 : i32 to index
    %306 = memref.load %arg5[%305] : memref<27xf32, #tpu.memory_space<smem>>
    %c4_i32_60 = arith.constant 4 : i32
    %307 = arith.cmpi sle, %303, %c4_i32_60 : i32
    %c7_i32_61 = arith.constant 7 : i32
    %308 = arith.cmpi sle, %303, %c7_i32_61 : i32
    %c3_i32_62 = arith.constant 3 : i32
    %309 = arith.subi %303, %c3_i32_62 : i32
    %c5_i32_63 = arith.constant 5 : i32
    %310 = arith.select %308, %309, %c5_i32_63 : i32
    %311 = arith.select %307, %303, %310 : i32
    %c2_i32_64 = arith.constant 2 : i32
    %312 = arith.subi %303, %c2_i32_64 : i32
    %c0_i32_65 = arith.constant 0 : i32
    %c5_i32_66 = arith.constant 5 : i32
    %313 = arith.maxsi %c0_i32_65, %312 : i32
    %314 = arith.minsi %c5_i32_66, %313 : i32
    %c12_i32 = arith.constant 12 : i32
    %315 = arith.addi %c12_i32, %314 : i32
    %316 = arith.index_cast %315 : i32 to index
    %c0_67 = arith.constant 0 : index
    %c0_68 = arith.constant 0 : index
    %317 = vector.load %arg1[%316, %c0_67, %c0_68] : memref<18x9x4xf32, #tpu.memory_space<vmem>>, vector<1x9x4xf32>
    %318 = vector.shape_cast %317 : vector<1x9x4xf32> to vector<9x4xf32>
    %319 = vector.extract_strided_slice %318 {offsets = [0, 0], sizes = [4, 4], strides = [1, 1]} : vector<9x4xf32> to vector<4x4xf32>
    %320 = vector.extract_strided_slice %318 {offsets = [8, 0], sizes = [1, 4], strides = [1, 1]} : vector<9x4xf32> to vector<1x4xf32>
    %cst_69 = arith.constant dense<0.000000e+00> : vector<4xf32>
    %321 = vector.multi_reduction <add>, %164, %cst_69 [0] : vector<2x4xf32> to vector<4xf32>
    %322 = vector.shape_cast %321 : vector<4xf32> to vector<1x4xf32>
    %cst_70 = arith.constant 2.000000e+00 : f32
    %323 = vector.broadcast %cst_70 : f32 to vector<1x4xf32>
    %324 = arith.divf %322, %323 : vector<1x4xf32>
    %325 = vector.broadcast %324 : vector<1x4xf32> to vector<2x4xf32>
    %326 = arith.subf %164, %325 : vector<2x4xf32>
    %327 = arith.mulf %326, %326 : vector<2x4xf32>
    %cst_71 = arith.constant dense<0.000000e+00> : vector<4xf32>
    %328 = vector.multi_reduction <add>, %327, %cst_71 [0] : vector<2x4xf32> to vector<4xf32>
    %329 = vector.shape_cast %328 : vector<4xf32> to vector<1x4xf32>
    %cst_72 = arith.constant 2.000000e+00 : f32
    %330 = vector.broadcast %cst_72 : f32 to vector<1x4xf32>
    %331 = arith.divf %329, %330 : vector<1x4xf32>
    %332 = vector.broadcast %324 : vector<1x4xf32> to vector<2x4xf32>
    %333 = arith.subf %164, %332 : vector<2x4xf32>
    %cst_73 = arith.constant 9.99999974E-6 : f32
    %334 = vector.broadcast %cst_73 : f32 to vector<1x4xf32>
    %335 = arith.addf %331, %334 : vector<1x4xf32>
    %336 = math.rsqrt %335 : vector<1x4xf32>
    %337 = vector.broadcast %336 : vector<1x4xf32> to vector<2x4xf32>
    %338 = arith.mulf %333, %337 : vector<2x4xf32>
    %cst_74 = arith.constant dense<0.000000e+00> : vector<4xf32>
    %339 = vector.multi_reduction <add>, %164, %cst_74 [0] : vector<2x4xf32> to vector<4xf32>
    %340 = vector.shape_cast %339 : vector<4xf32> to vector<1x4xf32>
    %cst_75 = arith.constant 2.000000e+00 : f32
    %341 = vector.broadcast %cst_75 : f32 to vector<1x4xf32>
    %342 = arith.divf %340, %341 : vector<1x4xf32>
    %343 = vector.broadcast %342 : vector<1x4xf32> to vector<2x4xf32>
    %344 = arith.subf %164, %343 : vector<2x4xf32>
    %345 = arith.mulf %344, %344 : vector<2x4xf32>
    %cst_76 = arith.constant dense<0.000000e+00> : vector<4xf32>
    %346 = vector.multi_reduction <add>, %345, %cst_76 [0] : vector<2x4xf32> to vector<4xf32>
    %347 = vector.shape_cast %346 : vector<4xf32> to vector<1x4xf32>
    %cst_77 = arith.constant 2.000000e+00 : f32
    %348 = vector.broadcast %cst_77 : f32 to vector<1x4xf32>
    %349 = arith.divf %347, %348 : vector<1x4xf32>
    %350 = vector.broadcast %342 : vector<1x4xf32> to vector<2x4xf32>
    %351 = arith.subf %164, %350 : vector<2x4xf32>
    %cst_78 = arith.constant 9.99999974E-6 : f32
    %352 = vector.broadcast %cst_78 : f32 to vector<1x4xf32>
    %353 = arith.addf %349, %352 : vector<1x4xf32>
    %354 = math.rsqrt %353 : vector<1x4xf32>
    %355 = vector.broadcast %354 : vector<1x4xf32> to vector<2x4xf32>
    %356 = arith.mulf %351, %355 : vector<2x4xf32>
    %357 = vector.extract_strided_slice %164 {offsets = [0, 0], sizes = [2, 1], strides = [1, 1]} : vector<2x4xf32> to vector<2x1xf32>
    %358 = vector.extract_strided_slice %319 {offsets = [0, 0], sizes = [1, 4], strides = [1, 1]} : vector<4x4xf32> to vector<1x4xf32>
    %359 = vector.broadcast %357 : vector<2x1xf32> to vector<2x4xf32>
    %360 = vector.broadcast %358 : vector<1x4xf32> to vector<2x4xf32>
    %361 = arith.mulf %359, %360 : vector<2x4xf32>
    %362 = vector.extract_strided_slice %164 {offsets = [0, 1], sizes = [2, 1], strides = [1, 1]} : vector<2x4xf32> to vector<2x1xf32>
    %363 = vector.extract_strided_slice %319 {offsets = [1, 0], sizes = [1, 4], strides = [1, 1]} : vector<4x4xf32> to vector<1x4xf32>
    %364 = vector.broadcast %362 : vector<2x1xf32> to vector<2x4xf32>
    %365 = vector.broadcast %363 : vector<1x4xf32> to vector<2x4xf32>
    %366 = arith.mulf %364, %365 : vector<2x4xf32>
    %367 = arith.addf %361, %366 : vector<2x4xf32>
    %368 = vector.extract_strided_slice %164 {offsets = [0, 2], sizes = [2, 1], strides = [1, 1]} : vector<2x4xf32> to vector<2x1xf32>
    %369 = vector.extract_strided_slice %319 {offsets = [2, 0], sizes = [1, 4], strides = [1, 1]} : vector<4x4xf32> to vector<1x4xf32>
    %370 = vector.broadcast %368 : vector<2x1xf32> to vector<2x4xf32>
    %371 = vector.broadcast %369 : vector<1x4xf32> to vector<2x4xf32>
    %372 = arith.mulf %370, %371 : vector<2x4xf32>
    %373 = arith.addf %367, %372 : vector<2x4xf32>
    %374 = vector.extract_strided_slice %164 {offsets = [0, 3], sizes = [2, 1], strides = [1, 1]} : vector<2x4xf32> to vector<2x1xf32>
    %375 = vector.extract_strided_slice %319 {offsets = [3, 0], sizes = [1, 4], strides = [1, 1]} : vector<4x4xf32> to vector<1x4xf32>
    %376 = vector.broadcast %374 : vector<2x1xf32> to vector<2x4xf32>
    %377 = vector.broadcast %375 : vector<1x4xf32> to vector<2x4xf32>
    %378 = arith.mulf %376, %377 : vector<2x4xf32>
    %379 = arith.addf %373, %378 : vector<2x4xf32>
    %380 = vector.broadcast %320 : vector<1x4xf32> to vector<2x4xf32>
    %381 = arith.addf %379, %380 : vector<2x4xf32>
    %382 = vector.broadcast %311 : i32 to vector<2x4xi32>
    %c2_i32_79 = arith.constant 2 : i32
    %383 = vector.broadcast %c2_i32_79 : i32 to vector<2x4xi32>
    %384 = arith.cmpi eq, %382, %383 : vector<2x4xi32>
    %cst_80 = arith.constant 0.000000e+00 : f32
    %385 = vector.broadcast %cst_80 : f32 to vector<2x4xf32>
    %386 = arith.maximumf %381, %385 : vector<2x4xf32>
    %c3_i32_81 = arith.constant 3 : i32
    %387 = vector.broadcast %c3_i32_81 : i32 to vector<2x4xi32>
    %388 = arith.cmpi eq, %382, %387 : vector<2x4xi32>
    %389 = arith.negf %381 : vector<2x4xf32>
    %390 = math.exp %389 : vector<2x4xf32>
    %cst_82 = arith.constant 1.000000e+00 : f32
    %391 = vector.broadcast %cst_82 : f32 to vector<2x4xf32>
    %392 = arith.addf %391, %390 : vector<2x4xf32>
    %393 = arith.divf %391, %392 : vector<2x4xf32>
    %394 = math.tanh %381 : vector<2x4xf32>
    %395 = arith.select %388, %393, %394 : vector<2x4xi1>, vector<2x4xf32>
    %396 = arith.select %384, %386, %395 : vector<2x4xi1>, vector<2x4xf32>
    %c0_i32_83 = arith.constant 0 : i32
    %397 = vector.broadcast %c0_i32_83 : i32 to vector<2x4xi32>
    %398 = arith.cmpi eq, %382, %397 : vector<2x4xi32>
    %c1_i32_84 = arith.constant 1 : i32
    %399 = vector.broadcast %c1_i32_84 : i32 to vector<2x4xi32>
    %400 = arith.cmpi eq, %382, %399 : vector<2x4xi32>
    %c5_i32_85 = arith.constant 5 : i32
    %401 = vector.broadcast %c5_i32_85 : i32 to vector<2x4xi32>
    %402 = arith.cmpi eq, %382, %401 : vector<2x4xi32>
    %cst_86 = arith.constant 0.000000e+00 : f32
    %403 = vector.broadcast %cst_86 : f32 to vector<2x4xf32>
    %404 = arith.select %402, %403, %396 : vector<2x4xi1>, vector<2x4xf32>
    %405 = arith.select %400, %356, %404 : vector<2x4xi1>, vector<2x4xf32>
    %406 = arith.select %398, %338, %405 : vector<2x4xi1>, vector<2x4xf32>
    %407 = vector.broadcast %306 : f32 to vector<2x4xf32>
    %408 = arith.mulf %407, %406 : vector<2x4xf32>
    %409 = arith.addf %302, %408 : vector<2x4xf32>
    %cst_87 = arith.constant 2.000000e+00 : f32
    %410 = vector.broadcast %cst_87 : f32 to vector<2x4xf32>
    %411 = arith.divf %409, %410 : vector<2x4xf32>
    %c1_88 = arith.constant 1 : index
    %412 = memref.load %arg4[%c1_88] : memref<3xi32, #tpu.memory_space<smem>>
    %c4_i32_89 = arith.constant 4 : i32
    %413 = arith.addi %c4_i32_89, %412 : i32
    %414 = arith.index_cast %413 : i32 to index
    %415 = memref.load %arg6[%414] : memref<12xf32, #tpu.memory_space<smem>>
    %416 = vector.broadcast %412 : i32 to vector<2x4xi32>
    %c0_i32_90 = arith.constant 0 : i32
    %417 = vector.broadcast %c0_i32_90 : i32 to vector<2x4xi32>
    %418 = arith.cmpi eq, %416, %417 : vector<2x4xi32>
    %cst_91 = arith.constant 0.000000e+00 : f32
    %419 = vector.broadcast %cst_91 : f32 to vector<2x4xf32>
    %420 = arith.maximumf %411, %419 : vector<2x4xf32>
    %c1_i32_92 = arith.constant 1 : i32
    %421 = vector.broadcast %c1_i32_92 : i32 to vector<2x4xi32>
    %422 = arith.cmpi eq, %416, %421 : vector<2x4xi32>
    %423 = arith.negf %411 : vector<2x4xf32>
    %424 = math.exp %423 : vector<2x4xf32>
    %cst_93 = arith.constant 1.000000e+00 : f32
    %425 = vector.broadcast %cst_93 : f32 to vector<2x4xf32>
    %426 = arith.addf %425, %424 : vector<2x4xf32>
    %427 = arith.divf %425, %426 : vector<2x4xf32>
    %c2_i32_94 = arith.constant 2 : i32
    %428 = vector.broadcast %c2_i32_94 : i32 to vector<2x4xi32>
    %429 = arith.cmpi eq, %416, %428 : vector<2x4xi32>
    %430 = math.tanh %411 : vector<2x4xf32>
    %431 = arith.select %429, %430, %411 : vector<2x4xi1>, vector<2x4xf32>
    %432 = arith.select %422, %427, %431 : vector<2x4xi1>, vector<2x4xf32>
    %433 = arith.select %418, %420, %432 : vector<2x4xi1>, vector<2x4xf32>
    %434 = vector.broadcast %415 : f32 to vector<2x4xf32>
    %435 = arith.mulf %434, %433 : vector<2x4xf32>
    %436 = arith.addf %164, %435 : vector<2x4xf32>
    %cst_95 = arith.constant 2.000000e+00 : f32
    %437 = vector.broadcast %cst_95 : f32 to vector<2x4xf32>
    %438 = arith.divf %436, %437 : vector<2x4xf32>
    %c2_96 = arith.constant 2 : index
    %439 = memref.load %arg4[%c2_96] : memref<3xi32, #tpu.memory_space<smem>>
    %c8_i32 = arith.constant 8 : i32
    %440 = arith.addi %c8_i32, %439 : i32
    %441 = arith.index_cast %440 : i32 to index
    %442 = memref.load %arg6[%441] : memref<12xf32, #tpu.memory_space<smem>>
    %443 = vector.broadcast %439 : i32 to vector<2x4xi32>
    %c0_i32_97 = arith.constant 0 : i32
    %444 = vector.broadcast %c0_i32_97 : i32 to vector<2x4xi32>
    %445 = arith.cmpi eq, %443, %444 : vector<2x4xi32>
    %cst_98 = arith.constant 0.000000e+00 : f32
    %446 = vector.broadcast %cst_98 : f32 to vector<2x4xf32>
    %447 = arith.maximumf %438, %446 : vector<2x4xf32>
    %c1_i32_99 = arith.constant 1 : i32
    %448 = vector.broadcast %c1_i32_99 : i32 to vector<2x4xi32>
    %449 = arith.cmpi eq, %443, %448 : vector<2x4xi32>
    %450 = arith.negf %438 : vector<2x4xf32>
    %451 = math.exp %450 : vector<2x4xf32>
    %cst_100 = arith.constant 1.000000e+00 : f32
    %452 = vector.broadcast %cst_100 : f32 to vector<2x4xf32>
    %453 = arith.addf %452, %451 : vector<2x4xf32>
    %454 = arith.divf %452, %453 : vector<2x4xf32>
    %c2_i32_101 = arith.constant 2 : i32
    %455 = vector.broadcast %c2_i32_101 : i32 to vector<2x4xi32>
    %456 = arith.cmpi eq, %443, %455 : vector<2x4xi32>
    %457 = math.tanh %438 : vector<2x4xf32>
    %458 = arith.select %456, %457, %438 : vector<2x4xi1>, vector<2x4xf32>
    %459 = arith.select %449, %454, %458 : vector<2x4xi1>, vector<2x4xf32>
    %460 = arith.select %445, %447, %459 : vector<2x4xi1>, vector<2x4xf32>
    %461 = vector.broadcast %442 : f32 to vector<2x4xf32>
    %462 = arith.mulf %461, %460 : vector<2x4xf32>
    %c0_102 = arith.constant 0 : index
    %c0_103 = arith.constant 0 : index
    %463 = vector.load %arg2[%c0_102, %c0_103] : memref<5x4xf32, #tpu.memory_space<vmem>>, vector<5x4xf32>
    %464 = vector.extract_strided_slice %463 {offsets = [0, 0], sizes = [4, 4], strides = [1, 1]} : vector<5x4xf32> to vector<4x4xf32>
    %465 = vector.extract_strided_slice %463 {offsets = [4, 0], sizes = [1, 4], strides = [1, 1]} : vector<5x4xf32> to vector<1x4xf32>
    %466 = vector.extract_strided_slice %462 {offsets = [0, 0], sizes = [2, 1], strides = [1, 1]} : vector<2x4xf32> to vector<2x1xf32>
    %467 = vector.extract_strided_slice %464 {offsets = [0, 0], sizes = [1, 4], strides = [1, 1]} : vector<4x4xf32> to vector<1x4xf32>
    %468 = vector.broadcast %466 : vector<2x1xf32> to vector<2x4xf32>
    %469 = vector.broadcast %467 : vector<1x4xf32> to vector<2x4xf32>
    %470 = arith.mulf %468, %469 : vector<2x4xf32>
    %471 = vector.extract_strided_slice %462 {offsets = [0, 1], sizes = [2, 1], strides = [1, 1]} : vector<2x4xf32> to vector<2x1xf32>
    %472 = vector.extract_strided_slice %464 {offsets = [1, 0], sizes = [1, 4], strides = [1, 1]} : vector<4x4xf32> to vector<1x4xf32>
    %473 = vector.broadcast %471 : vector<2x1xf32> to vector<2x4xf32>
    %474 = vector.broadcast %472 : vector<1x4xf32> to vector<2x4xf32>
    %475 = arith.mulf %473, %474 : vector<2x4xf32>
    %476 = arith.addf %470, %475 : vector<2x4xf32>
    %477 = vector.extract_strided_slice %462 {offsets = [0, 2], sizes = [2, 1], strides = [1, 1]} : vector<2x4xf32> to vector<2x1xf32>
    %478 = vector.extract_strided_slice %464 {offsets = [2, 0], sizes = [1, 4], strides = [1, 1]} : vector<4x4xf32> to vector<1x4xf32>
    %479 = vector.broadcast %477 : vector<2x1xf32> to vector<2x4xf32>
    %480 = vector.broadcast %478 : vector<1x4xf32> to vector<2x4xf32>
    %481 = arith.mulf %479, %480 : vector<2x4xf32>
    %482 = arith.addf %476, %481 : vector<2x4xf32>
    %483 = vector.extract_strided_slice %462 {offsets = [0, 3], sizes = [2, 1], strides = [1, 1]} : vector<2x4xf32> to vector<2x1xf32>
    %484 = vector.extract_strided_slice %464 {offsets = [3, 0], sizes = [1, 4], strides = [1, 1]} : vector<4x4xf32> to vector<1x4xf32>
    %485 = vector.broadcast %483 : vector<2x1xf32> to vector<2x4xf32>
    %486 = vector.broadcast %484 : vector<1x4xf32> to vector<2x4xf32>
    %487 = arith.mulf %485, %486 : vector<2x4xf32>
    %488 = arith.addf %482, %487 : vector<2x4xf32>
    %489 = vector.broadcast %465 : vector<1x4xf32> to vector<2x4xf32>
    %490 = arith.addf %488, %489 : vector<2x4xf32>
    %c0_104 = arith.constant 0 : index
    %c0_105 = arith.constant 0 : index
    %491 = vector.load %arg7[%c0_104, %c0_105] : memref<2x4xf32, #tpu.memory_space<vmem>>, vector<2x4xf32>
    tpu.vector_store %arg7[%c0_104, %c0_105], %490 {strides = array<i32>} : memref<2x4xf32, #tpu.memory_space<vmem>>, vector<2x4xf32>,
    return
  }
}

</mosaic_0001>

<llo_original>
// kernel: pallas_forward.1
$region0: #{pallas_forward.1}
  #allocation0 [shape = 'u32[]', space=smem, size = 0x4, offset = 0x4, fixed_abs, tag = 'smem constant byte address 0x4 - core index']
  #allocation1 [shape = 'u32[72,128]{1,0:T(1,128)}', space=vmem, size = 0x9000, scoped, tag = 'internal scratch']
  %s0 = inlined_call_operand.vmem [shape: f32[2,8], index: 0, kind: input, shape index: {}]
  %s1 = inlined_call_operand.vmem [shape: f32[18,9,4], index: 1, kind: input, shape index: {}]
  %s2 = inlined_call_operand.vmem [shape: f32[5,4], index: 2, kind: input, shape index: {}]
  %s3 = inlined_call_operand.vmem [shape: s32[3], index: 3, kind: input, shape index: {}]
  %s4 = inlined_call_operand.vmem [shape: s32[3], index: 4, kind: input, shape index: {}]
  %s5 = inlined_call_operand.vmem [shape: f32[27], index: 5, kind: input, shape index: {}]
  %s6 = inlined_call_operand.vmem [shape: f32[12], index: 6, kind: input, shape index: {}]
  %s7 = inlined_call_operand.hbm [shape: f32[2,4], index: 7, kind: output, shape index: {}]
  %s8 = sld [smem:[#allocation0]]
  $region54: #{pallas_forward.1} parent=0
    _
  %s10 = ssub.s32 1, %s8
  %s11 = scalar_select 0, %s10, %s8
  $region1: #{pallas_forward.1} parent=0
    #allocation2 [shape = 'u8[512]{0}', space=smem, size = 0x200, scoped, tag = 'input window, operand 3, single buffered']
    #allocation3 [shape = 's32[1]{0}', space=sflag, size = 0x4, scoped, tag = 'scoped memory for pallas_forward.1']
    #allocation4 [shape = 's32[1]{0}', space=sflag, size = 0x4, scoped, tag = 'scoped memory for pallas_forward.1']
    #allocation5 [shape = 'u8[512]{0}', space=smem, size = 0x200, scoped, tag = 'input window, operand 4, single buffered']
    #allocation6 [shape = 's32[1]{0}', space=sflag, size = 0x4, scoped, tag = 'scoped memory for pallas_forward.1']
    #allocation7 [shape = 'u8[512]{0}', space=smem, size = 0x200, scoped, tag = 'input window, operand 5, single buffered']
    #allocation8 [shape = 'u8[512]{0}', space=smem, size = 0x200, scoped, tag = 'input window, operand 6, single buffered']
    #allocation9 [shape = 's32[1]{0}', space=sflag, size = 0x4, scoped, tag = 'scoped memory for pallas_forward.1']
    #allocation10 [shape = 'u8[1024]{0}', space=vmem, size = 0x400, scoped, tag = 'output window, operand 0, single buffered']
    %12 = vsyncpa [#allocation4], 0
    %13 = vsyncpa [#allocation6], 0
    %14 = vsyncpa [#allocation9], 0
    %15 = vsyncpa [#allocation3], 0
    // Predicated region
    $region2: #{pallas_forward.1} parent=1 // pred_check
      _
    $region3: #{pallas_forward.1} parent=1 // pred_check_branch
      %17 = sbr.rel (0) target = $region5
    $region4: #{pallas_forward.1} parent=1 // pred_region
      _
    $region5: #{pallas_forward.1} parent=1 // pred_fallthru
      _
    // Predicated region
    $region6: #{pallas_forward.1} parent=1 // pred_check
      _
    $region7: #{pallas_forward.1} parent=1 // pred_check_branch
      %19 = sbr.rel (0) target = $region9
    $region8: #{pallas_forward.1} parent=1 // pred_region
      _
    $region9: #{pallas_forward.1} parent=1 // pred_fallthru
      _
    // Predicated region
    $region10: #{pallas_forward.1} parent=1 // pred_check
      _
    $region11: #{pallas_forward.1} parent=1 // pred_check_branch
      %21 = sbr.rel (0) target = $region13
    $region12: #{pallas_forward.1} parent=1 // pred_region
      _
    $region13: #{pallas_forward.1} parent=1 // pred_fallthru
      _
    // Predicated region
    $region14: #{pallas_forward.1} parent=1 // pred_check
      _
    $region15: #{pallas_forward.1} parent=1 // pred_check_branch
      %23 = sbr.rel (0) target = $region17
    $region16: #{pallas_forward.1} parent=1 // pred_region
      %25 = vsyncadd [#allocation4], 0
      %s27 = sshll.u32 %s3, 4
      %s28 = int_to_ptr.vmem [resolvable:$true] %s27
      %30 = dma.vmem_to_smem %s28, 16, [#allocation2], [#allocation4]
    $region17: #{pallas_forward.1} parent=1 // pred_fallthru
      _
    // Predicated region
    $region18: #{pallas_forward.1} parent=1 // pred_check
      _
    $region19: #{pallas_forward.1} parent=1 // pred_check_branch
      %32 = sbr.rel (0) target = $region21
    $region20: #{pallas_forward.1} parent=1 // pred_region
      %34 = vsyncadd [#allocation6], 0
      %s36 = sshll.u32 %s4, 4
      %s37 = int_to_ptr.vmem [resolvable:$true] %s36
      %39 = dma.vmem_to_smem %s37, 16, [#allocation5], [#allocation6]
    $region21: #{pallas_forward.1} parent=1 // pred_fallthru
      _
    // Predicated region
    $region22: #{pallas_forward.1} parent=1 // pred_check
      _
    $region23: #{pallas_forward.1} parent=1 // pred_check_branch
      %41 = sbr.rel (0) target = $region25
    $region24: #{pallas_forward.1} parent=1 // pred_region
      %43 = vsyncadd [#allocation6], 0
      %s45 = sshll.u32 %s5, 4
      %s46 = int_to_ptr.vmem [resolvable:$true] %s45
      %48 = dma.vmem_to_smem %s46, 16, [#allocation7], [#allocation6]
    $region25: #{pallas_forward.1} parent=1 // pred_fallthru
      _
    // Predicated region
    $region26: #{pallas_forward.1} parent=1 // pred_check
      _
    $region27: #{pallas_forward.1} parent=1 // pred_check_branch
      %50 = sbr.rel (0) target = $region29
    $region28: #{pallas_forward.1} parent=1 // pred_region
      %52 = vsyncadd [#allocation9], 0
      %s54 = sshll.u32 %s6, 4
      %s55 = int_to_ptr.vmem [resolvable:$true] %s54
      %57 = dma.vmem_to_smem %s55, 16, [#allocation8], [#allocation9]
    $region29: #{pallas_forward.1} parent=1 // pred_fallthru
      _
    // Predicated region
    $region30: #{pallas_forward.1} parent=1 // pred_check
      _
    $region31: #{pallas_forward.1} parent=1 // pred_check_branch
      %59 = sbr.rel (0) target = $region33
    $region32: #{pallas_forward.1} parent=1 // pred_region
      %61 = dma.done [#allocation4], 16
    $region33: #{pallas_forward.1} parent=1 // pred_fallthru
      _
    // Predicated region
    $region34: #{pallas_forward.1} parent=1 // pred_check
      _
    $region35: #{pallas_forward.1} parent=1 // pred_check_branch
      %63 = sbr.rel (0) target = $region37
    $region36: #{pallas_forward.1} parent=1 // pred_region
      %65 = dma.done [#allocation6], 16
    $region37: #{pallas_forward.1} parent=1 // pred_fallthru
      _
    // Predicated region
    $region38: #{pallas_forward.1} parent=1 // pred_check
      _
    $region39: #{pallas_forward.1} parent=1 // pred_check_branch
      %67 = sbr.rel (0) target = $region41
    $region40: #{pallas_forward.1} parent=1 // pred_region
      %69 = dma.done [#allocation6], 16
    $region41: #{pallas_forward.1} parent=1 // pred_fallthru
      _
    // Predicated region
    $region42: #{pallas_forward.1} parent=1 // pred_check
      _
    $region43: #{pallas_forward.1} parent=1 // pred_check_branch
      %71 = sbr.rel (0) target = $region45
    $region44: #{pallas_forward.1} parent=1 // pred_region
      %73 = dma.done [#allocation9], 16
    $region45: #{pallas_forward.1} parent=1 // pred_fallthru
      _
    %74 = sfence
    %v75 = vld [vmem:[%s0] sm:$0x3]
    %s76 = sld [smem:[#allocation2]]
    %s77 = sld [smem:[#allocation7 + %s76]]
    %p78 = scmp.le.s32.totalorder %s76, 4
    %p79 = scmp.le.s32.totalorder %s76, 7
    %s80 = ssub.s32 %s76, 3
    %s81 = scalar_select %p79, %s80, 5
    %s82 = scalar_select %p78, %s76, %s81
    %s83 = ssub.s32 %s76, 2
    %p84 = scmp.gt.s32.totalorder %s83, 0
    %s85 = scalar_select %p84, %s83, 0
    %p86 = scmp.lt.s32.totalorder %s85, 5
    %s87 = scalar_select %p86, %s85, 5
    %s88 = smul.u32 %s87, 16
    %s89 = scalar_lea.vmem %s1, %s88
    %v90 = vld [vmem:[%s89] sm:$0xff]
    %v91 = vld [vmem:[%s89 + $0x8] sm:$0x1]
    %93 = vrot.lane.b32.xlu0 %v75, 124
    %v94 = vpop.permute.xlu0 %93
    %v96 = vadd.f32 %v75, %v94
    %v97 = vrcp.pop 2.0
    %v98 = vmul.f32 2.0, %v97
    %v99 = vsub.f32 1.0, %v98
    %v100 = vmul.f32 %v97, %v99
    %v101 = vadd.f32 %v97, %v100
    %vm102 = vweird.f32 %v97
    %v103 = vsel %vm102, %v97, %v101
    %v104 = vmul.f32 %v96, %v103
    %vm105 = vcmask 25600
    %v106 = vsel %vm105, %v104, 0.0
    %v107 = vrot.slane %v106, 4
    %v108 = vadd.f32 %v106, %v107
    %v109 = vrot.slane %v108, 2
    %v110 = vadd.f32 %v108, %v109
    %v111 = vrot.slane %v110, 1
    %v112 = vadd.f32 %v110, %v111
    %v113 = vmul.f32 %v112, %v103
    %v114 = vsub.f32 %v104, %v113
    %v115 = vmul.f32 %v114, %v114
    %v116 = vsel %vm105, %v115, 0.0
    %v117 = vrot.slane %v116, 4
    %v118 = vadd.f32 %v116, %v117
    %v119 = vrot.slane %v118, 2
    %v120 = vadd.f32 %v118, %v119
    %v121 = vrot.slane %v120, 1
    %v122 = vadd.f32 %v120, %v121
    %v123 = vmul.f32 %v122, %v103
    %v124 = vadd.f32 %v123, 1e-05
    %v125 = vrsqrt.pop %v124
    %v126 = vmul.f32 %v125, %v124
    %v127 = vmul.f32 %v126, %v125
    %v128 = vmul.f32 0.5, %v127
    %v129 = vsub.f32 1.5, %v128
    %v130 = vmul.f32 %v125, %v129
    %vm131 = vweird.f32 %v124
    %vm132 = vweird.f32 %v125
    %vm133 = vmor %vm131, %vm132
    %v134 = vsel %vm133, %v125, %v130
    %v135 = vmul.f32 %v114, %v134
    %v136 = vmax.f32 %v75, %v94
    %v137 = vsel %vm105, %v136, 0.0
    %v138 = vrot.slane %v137, 4
    %v139 = vadd.f32 %v137, %v138
    %v140 = vrot.slane %v139, 2
    %v141 = vadd.f32 %v139, %v140
    %v142 = vrot.slane %v141, 1
    %v143 = vadd.f32 %v141, %v142
    %v144 = vmul.f32 %v143, %v103
    %v145 = vsub.f32 %v136, %v144
    %v146 = vmul.f32 %v145, %v145
    %v147 = vsel %vm105, %v146, 0.0
    %v148 = vrot.slane %v147, 4
    %v149 = vadd.f32 %v147, %v148
    %v150 = vrot.slane %v149, 2
    %v151 = vadd.f32 %v149, %v150
    %v152 = vrot.slane %v151, 1
    %v153 = vadd.f32 %v151, %v152
    %v154 = vmul.f32 %v153, %v103
    %v155 = vadd.f32 %v154, 1e-05
    %v156 = vrsqrt.pop %v155
    %v157 = vmul.f32 %v156, %v155
    %v158 = vmul.f32 %v157, %v156
    %v159 = vmul.f32 0.5, %v158
    %v160 = vsub.f32 1.5, %v159
    %v161 = vmul.f32 %v156, %v160
    %vm162 = vweird.f32 %v155
    %vm163 = vweird.f32 %v156
    %vm164 = vmor %vm162, %vm163
    %v165 = vsel %vm164, %v156, %v161
    %v166 = vmul.f32 %v145, %v165
    %167 = vset.pattern.permute.xlu0 0
    %168 = vperm.xlu0 %167, %v75
    %v169 = vpop.permute.xlu0 %168
    %v171 = vperm.slane %v90, 0
    %v172 = vmul.f32 %v169, %v171
    %173 = vset.pattern.permute.xlu0 1
    %174 = vperm.xlu0 %173, %v75
    %v175 = vpop.permute.xlu0 %174
    %v177 = vperm.slane %v90, 1
    %v178 = vmul.f32 %v175, %v177
    %v179 = vadd.f32 %v172, %v178
    %180 = vset.pattern.permute.xlu0 2
    %181 = vperm.xlu0 %180, %v75
    %v182 = vpop.permute.xlu0 %181
    %v184 = vperm.slane %v90, 2
    %v185 = vmul.f32 %v182, %v184
    %v186 = vadd.f32 %v179, %v185
    %187 = vset.pattern.permute.xlu0 3
    %188 = vperm.xlu0 %187, %v75
    %v189 = vpop.permute.xlu0 %188
    %v191 = vperm.slane %v90, 3
    %v192 = vmul.f32 %v189, %v191
    %v193 = vadd.f32 %v186, %v192
    %194 = vset.pattern.permute.xlu0 4
    %195 = vperm.xlu0 %194, %v75
    %v196 = vpop.permute.xlu0 %195
    %v198 = vperm.slane %v90, 4
    %v199 = vmul.f32 %v196, %v198
    %v200 = vadd.f32 %v193, %v199
    %201 = vset.pattern.permute.xlu0 5
    %202 = vperm.xlu0 %201, %v75
    %v203 = vpop.permute.xlu0 %202
    %v205 = vperm.slane %v90, 5
    %v206 = vmul.f32 %v203, %v205
    %v207 = vadd.f32 %v200, %v206
    %208 = vset.pattern.permute.xlu0 6
    %209 = vperm.xlu0 %208, %v75
    %v210 = vpop.permute.xlu0 %209
    %v212 = vperm.slane %v90, 6
    %v213 = vmul.f32 %v210, %v212
    %v214 = vadd.f32 %v207, %v213
    %215 = vset.pattern.permute.xlu0 7
    %216 = vperm.xlu0 %215, %v75
    %v217 = vpop.permute.xlu0 %216
    %v219 = vperm.slane %v90, 7
    %v220 = vmul.f32 %v217, %v219
    %v221 = vadd.f32 %v214, %v220
    %v222 = vperm.slane %v91, 0
    %v223 = vadd.f32 %v221, %v222
    %v224 = vstv %s82
    %vm225 = vcmp.eq.s32.totalorder %v224, 2
    %v226 = vmax.f32 %v223, 0.0
    %vm227 = vcmp.eq.s32.totalorder %v224, 3
    %v228 = vxor.u32 %v223, 2147483648
    %v229 = vmul.f32 %v228, 1.442695
    %v230 = vpow.pop %v229
    %v231 = vadd.f32 %v230, 1.0
    %v232 = vrcp.pop %v231
    %v233 = vmul.f32 %v231, %v232
    %v234 = vsub.f32 1.0, %v233
    %v235 = vmul.f32 %v232, %v234
    %v236 = vadd.f32 %v232, %v235
    %vm237 = vweird.f32 %v231
    %vm238 = vweird.f32 %v232
    %vm239 = vmor %vm237, %vm238
    %v240 = vsel %vm239, %v232, %v236
    %v241 = vand.u32 2147483647, %v231
    %vm242 = vcmp.eq.f32.partialorder %v241, 8.507059e+37
    %v243 = vand.u32 %v231, 2147483648
    %v244 = vor.u32 1.1754944e-38, %v243
    %v245 = vsel %vm242, %v244, %v240
    %v246 = vmul.f32 1.0, %v245
    %v247 = vtanh.pop %v223
    %v248 = vsel %vm227, %v246, %v247
    %v249 = vsel %vm225, %v226, %v248
    %vm250 = vcmp.eq.s32.totalorder %v224, 0
    %vm251 = vcmp.eq.s32.totalorder %v224, 1
    %vm252 = vcmp.eq.s32.totalorder %v224, 5
    %v253 = vsel %vm252, 0.0, %v249
    %v254 = vsel %vm251, %v166, %v253
    %v255 = vsel %vm250, %v135, %v254
    %v256 = vstv %s77
    %v257 = vmul.f32 %v256, %v255
    %s258 = sld [smem:[#allocation5]]
    %s259 = sld [smem:[#allocation8 + %s258]]
    %v260 = vstv %s258
    %vm261 = vcmp.eq.s32.totalorder %v260, 0
    %v262 = vmax.f32 %v257, 0.0
    %vm263 = vcmp.eq.s32.totalorder %v260, 1
    %v264 = vxor.u32 %v257, 2147483648
    %v265 = vmul.f32 %v264, 1.442695
    %v266 = vpow.pop %v265
    %v267 = vadd.f32 %v266, 1.0
    %v268 = vrcp.pop %v267
    %v269 = vmul.f32 %v267, %v268
    %v270 = vsub.f32 1.0, %v269
    %v271 = vmul.f32 %v268, %v270
    %v272 = vadd.f32 %v268, %v271
    %vm273 = vweird.f32 %v267
    %vm274 = vweird.f32 %v268
    %vm275 = vmor %vm273, %vm274
    %v276 = vsel %vm275, %v268, %v272
    %v277 = vand.u32 2147483647, %v267
    %vm278 = vcmp.eq.f32.partialorder %v277, 8.507059e+37
    %v279 = vand.u32 %v267, 2147483648
    %v280 = vor.u32 1.1754944e-38, %v279
    %v281 = vsel %vm278, %v280, %v276
    %v282 = vmul.f32 1.0, %v281
    %vm283 = vcmp.eq.s32.totalorder %v260, 2
    %v284 = vtanh.pop %v257
    %v285 = vsel %vm283, %v284, %v257
    %v286 = vsel %vm263, %v282, %v285
    %v287 = vsel %vm261, %v262, %v286
    %v288 = vstv %s259
    %v289 = vmul.f32 %v288, %v287
    %s290 = sld [smem:[#allocation2 + $0x1]]
    %s291 = sadd.s32 %s290, 9
    %s292 = sld [smem:[#allocation7 + %s291]]
    %p293 = scmp.le.s32.totalorder %s290, 4
    %p294 = scmp.le.s32.totalorder %s290, 7
    %s295 = ssub.s32 %s290, 3
    %s296 = scalar_select %p294, %s295, 5
    %s297 = scalar_select %p293, %s290, %s296
    %s298 = ssub.s32 %s290, 2
    %p299 = scmp.gt.s32.totalorder %s298, 0
    %s300 = scalar_select %p299, %s298, 0
    %p301 = scmp.lt.s32.totalorder %s300, 5
    %s302 = scalar_select %p301, %s300, 5
    %s303 = sadd.s32 %s302, 6
    %s304 = smul.u32 %s303, 16
    %s305 = scalar_lea.vmem %s1, %s304
    %v306 = vld [vmem:[%s305] sm:$0xff]
    %v307 = vld [vmem:[%s305 + $0x8] sm:$0x1]
    %v308 = vperm.slane %v306, 0
    %v309 = vmul.f32 %v169, %v308
    %v310 = vperm.slane %v306, 1
    %v311 = vmul.f32 %v175, %v310
    %v312 = vadd.f32 %v309, %v311
    %v313 = vperm.slane %v306, 2
    %v314 = vmul.f32 %v182, %v313
    %v315 = vadd.f32 %v312, %v314
    %v316 = vperm.slane %v306, 3
    %v317 = vmul.f32 %v189, %v316
    %v318 = vadd.f32 %v315, %v317
    %v319 = vperm.slane %v306, 4
    %v320 = vmul.f32 %v196, %v319
    %v321 = vadd.f32 %v318, %v320
    %v322 = vperm.slane %v306, 5
    %v323 = vmul.f32 %v203, %v322
    %v324 = vadd.f32 %v321, %v323
    %v325 = vperm.slane %v306, 6
    %v326 = vmul.f32 %v210, %v325
    %v327 = vadd.f32 %v324, %v326
    %v328 = vperm.slane %v306, 7
    %v329 = vmul.f32 %v217, %v328
    %v330 = vadd.f32 %v327, %v329
    %v331 = vperm.slane %v307, 0
    %v332 = vadd.f32 %v330, %v331
    %v333 = vstv %s297
    %vm334 = vcmp.eq.s32.totalorder %v333, 2
    %v335 = vmax.f32 %v332, 0.0
    %vm336 = vcmp.eq.s32.totalorder %v333, 3
    %v337 = vxor.u32 %v332, 2147483648
    %v338 = vmul.f32 %v337, 1.442695
    %v339 = vpow.pop %v338
    %v340 = vadd.f32 %v339, 1.0
    %v341 = vrcp.pop %v340
    %v342 = vmul.f32 %v340, %v341
    %v343 = vsub.f32 1.0, %v342
    %v344 = vmul.f32 %v341, %v343
    %v345 = vadd.f32 %v341, %v344
    %vm346 = vweird.f32 %v340
    %vm347 = vweird.f32 %v341
    %vm348 = vmor %vm346, %vm347
    %v349 = vsel %vm348, %v341, %v345
    %v350 = vand.u32 2147483647, %v340
    %vm351 = vcmp.eq.f32.partialorder %v350, 8.507059e+37
    %v352 = vand.u32 %v340, 2147483648
    %v353 = vor.u32 1.1754944e-38, %v352
    %v354 = vsel %vm351, %v353, %v349
    %v355 = vmul.f32 1.0, %v354
    %v356 = vtanh.pop %v332
    %v357 = vsel %vm336, %v355, %v356
    %v358 = vsel %vm334, %v335, %v357
    %vm359 = vcmp.eq.s32.totalorder %v333, 0
    %vm360 = vcmp.eq.s32.totalorder %v333, 1
    %vm361 = vcmp.eq.s32.totalorder %v333, 5
    %v362 = vsel %vm361, 0.0, %v358
    %v363 = vsel %vm360, %v166, %v362
    %v364 = vsel %vm359, %v135, %v363
    %v365 = vstv %s292
    %v366 = vmul.f32 %v365, %v364
    %s367 = sld [smem:[#allocation2 + $0x2]]
    %s368 = sadd.s32 %s367, 18
    %s369 = sld [smem:[#allocation7 + %s368]]
    %p370 = scmp.le.s32.totalorder %s367, 4
    %p371 = scmp.le.s32.totalorder %s367, 7
    %s372 = ssub.s32 %s367, 3
    %s373 = scalar_select %p371, %s372, 5
    %s374 = scalar_select %p370, %s367, %s373
    %s375 = ssub.s32 %s367, 2
    %p376 = scmp.gt.s32.totalorder %s375, 0
    %s377 = scalar_select %p376, %s375, 0
    %p378 = scmp.lt.s32.totalorder %s377, 5
    %s379 = scalar_select %p378, %s377, 5
    %s380 = sadd.s32 %s379, 12
    %s381 = smul.u32 %s380, 16
    %s382 = scalar_lea.vmem %s1, %s381
    %v383 = vld [vmem:[%s382] sm:$0xff]
    %v384 = vld [vmem:[%s382 + $0x8] sm:$0x1]
    %v385 = vsel %vm105, %v289, 0.0
    %v386 = vrot.slane %v385, 4
    %v387 = vadd.f32 %v385, %v386
    %v388 = vrot.slane %v387, 2
    %v389 = vadd.f32 %v387, %v388
    %v390 = vrot.slane %v389, 1
    %v391 = vadd.f32 %v389, %v390
    %v392 = vmul.f32 %v391, %v103
    %v393 = vsub.f32 %v289, %v392
    %v394 = vmul.f32 %v393, %v393
    %v395 = vsel %vm105, %v394, 0.0
    %v396 = vrot.slane %v395, 4
    %v397 = vadd.f32 %v395, %v396
    %v398 = vrot.slane %v397, 2
    %v399 = vadd.f32 %v397, %v398
    %v400 = vrot.slane %v399, 1
    %v401 = vadd.f32 %v399, %v400
    %v402 = vmul.f32 %v401, %v103
    %v403 = vadd.f32 %v402, 1e-05
    %v404 = vrsqrt.pop %v403
    %v405 = vmul.f32 %v404, %v403
    %v406 = vmul.f32 %v405, %v404
    %v407 = vmul.f32 0.5, %v406
    %v408 = vsub.f32 1.5, %v407
    %v409 = vmul.f32 %v404, %v408
    %vm410 = vweird.f32 %v403
    %vm411 = vweird.f32 %v404
    %vm412 = vmor %vm410, %vm411
    %v413 = vsel %vm412, %v404, %v409
    %v414 = vmul.f32 %v393, %v413
    %416 = vset.pattern.permute.xlu0 0
    %417 = vperm.xlu0 %416, %v289
    %v418 = vpop.permute.xlu0 %417
    %v420 = vperm.slane %v383, 0
    %v421 = vmul.f32 %v418, %v420
    %422 = vset.pattern.permute.xlu0 1
    %423 = vperm.xlu0 %422, %v289
    %v424 = vpop.permute.xlu0 %423
    %v426 = vperm.slane %v383, 1
    %v427 = vmul.f32 %v424, %v426
    %v428 = vadd.f32 %v421, %v427
    %429 = vset.pattern.permute.xlu0 2
    %430 = vperm.xlu0 %429, %v289
    %v431 = vpop.permute.xlu0 %430
    %v433 = vperm.slane %v383, 2
    %v434 = vmul.f32 %v431, %v433
    %v435 = vadd.f32 %v428, %v434
    %436 = vset.pattern.permute.xlu0 3
    %437 = vperm.xlu0 %436, %v289
    %v438 = vpop.permute.xlu0 %437
    %v440 = vperm.slane %v383, 3
    %v441 = vmul.f32 %v438, %v440
    %v442 = vadd.f32 %v435, %v441
    %v443 = vperm.slane %v384, 0
    %v444 = vadd.f32 %v442, %v443
    %v445 = vstv %s374
    %vm446 = vcmp.eq.s32.totalorder %v445, 2
    %v447 = vmax.f32 %v444, 0.0
    %vm448 = vcmp.eq.s32.totalorder %v445, 3
    %v449 = vxor.u32 %v444, 2147483648
    %v450 = vmul.f32 %v449, 1.442695
    %v451 = vpow.pop %v450
    %v452 = vadd.f32 %v451, 1.0
    %v453 = vrcp.pop %v452
    %v454 = vmul.f32 %v452, %v453
    %v455 = vsub.f32 1.0, %v454
    %v456 = vmul.f32 %v453, %v455
    %v457 = vadd.f32 %v453, %v456
    %vm458 = vweird.f32 %v452
    %vm459 = vweird.f32 %v453
    %vm460 = vmor %vm458, %vm459
    %v461 = vsel %vm460, %v453, %v457
    %v462 = vand.u32 2147483647, %v452
    %vm463 = vcmp.eq.f32.partialorder %v462, 8.507059e+37
    %v464 = vand.u32 %v452, 2147483648
    %v465 = vor.u32 1.1754944e-38, %v464
    %v466 = vsel %vm463, %v465, %v461
    %v467 = vmul.f32 1.0, %v466
    %v468 = vtanh.pop %v444
    %v469 = vsel %vm448, %v467, %v468
    %v470 = vsel %vm446, %v447, %v469
    %vm471 = vcmp.eq.s32.totalorder %v445, 0
    %vm472 = vcmp.eq.s32.totalorder %v445, 1
    %vm473 = vcmp.eq.s32.totalorder %v445, 5
    %v474 = vsel %vm473, 0.0, %v470
    %v475 = vsel %vm472, %v414, %v474
    %v476 = vsel %vm471, %v414, %v475
    %v477 = vstv %s369
    %v478 = vmul.f32 %v477, %v476
    %v479 = vadd.f32 %v366, %v478
    %v480 = vmul.f32 %v479, %v103
    %s481 = sld [smem:[#allocation5 + $0x1]]
    %s482 = sadd.s32 %s481, 4
    %s483 = sld [smem:[#allocation8 + %s482]]
    %v484 = vstv %s481
    %vm485 = vcmp.eq.s32.totalorder %v484, 0
    %v486 = vmax.f32 %v480, 0.0
    %vm487 = vcmp.eq.s32.totalorder %v484, 1
    %v488 = vxor.u32 %v480, 2147483648
    %v489 = vmul.f32 %v488, 1.442695
    %v490 = vpow.pop %v489
    %v491 = vadd.f32 %v490, 1.0
    %v492 = vrcp.pop %v491
    %v493 = vmul.f32 %v491, %v492
    %v494 = vsub.f32 1.0, %v493
    %v495 = vmul.f32 %v492, %v494
    %v496 = vadd.f32 %v492, %v495
    %vm497 = vweird.f32 %v491
    %vm498 = vweird.f32 %v492
    %vm499 = vmor %vm497, %vm498
    %v500 = vsel %vm499, %v492, %v496
    %v501 = vand.u32 2147483647, %v491
    %vm502 = vcmp.eq.f32.partialorder %v501, 8.507059e+37
    %v503 = vand.u32 %v491, 2147483648
    %v504 = vor.u32 1.1754944e-38, %v503
    %v505 = vsel %vm502, %v504, %v500
    %v506 = vmul.f32 1.0, %v505
    %vm507 = vcmp.eq.s32.totalorder %v484, 2
    %v508 = vtanh.pop %v480
    %v509 = vsel %vm507, %v508, %v480
    %v510 = vsel %vm487, %v506, %v509
    %v511 = vsel %vm485, %v486, %v510
    %v512 = vstv %s483
    %v513 = vmul.f32 %v512, %v511
    %v514 = vadd.f32 %v289, %v513
    %v515 = vmul.f32 %v514, %v103
    %s516 = sld [smem:[#allocation5 + $0x2]]
    %s517 = sadd.s32 %s516, 8
    %s518 = sld [smem:[#allocation8 + %s517]]
    %v519 = vstv %s516
    %vm520 = vcmp.eq.s32.totalorder %v519, 0
    %v521 = vmax.f32 %v515, 0.0
    %vm522 = vcmp.eq.s32.totalorder %v519, 1
    %v523 = vxor.u32 %v515, 2147483648
    %v524 = vmul.f32 %v523, 1.442695
    %v525 = vpow.pop %v524
    %v526 = vadd.f32 %v525, 1.0
    %v527 = vrcp.pop %v526
    %v528 = vmul.f32 %v526, %v527
    %v529 = vsub.f32 1.0, %v528
    %v530 = vmul.f32 %v527, %v529
    %v531 = vadd.f32 %v527, %v530
    %vm532 = vweird.f32 %v526
    %vm533 = vweird.f32 %v527
    %vm534 = vmor %vm532, %vm533
    %v535 = vsel %vm534, %v527, %v531
    %v536 = vand.u32 2147483647, %v526
    %vm537 = vcmp.eq.f32.partialorder %v536, 8.507059e+37
    %v538 = vand.u32 %v526, 2147483648
    %v539 = vor.u32 1.1754944e-38, %v538
    %v540 = vsel %vm537, %v539, %v535
    %v541 = vmul.f32 1.0, %v540
    %vm542 = vcmp.eq.s32.totalorder %v519, 2
    %v543 = vtanh.pop %v515
    %v544 = vsel %vm542, %v543, %v515
    %v545 = vsel %vm522, %v541, %v544
    %v546 = vsel %vm520, %v521, %v545
    %v547 = vstv %s518
    %v548 = vmul.f32 %v547, %v546
    %v549 = vld [vmem:[%s2] sm:$0x1f]
    %551 = vset.pattern.permute.xlu0 0
    %552 = vperm.xlu0 %551, %v548
    %v553 = vpop.permute.xlu0 %552
    %v555 = vperm.slane %v549, 0
    %v556 = vmul.f32 %v553, %v555
    %557 = vset.pattern.permute.xlu0 1
    %558 = vperm.xlu0 %557, %v548
    %v559 = vpop.permute.xlu0 %558
    %v561 = vperm.slane %v549, 1
    %v562 = vmul.f32 %v559, %v561
    %v563 = vadd.f32 %v556, %v562
    %564 = vset.pattern.permute.xlu0 2
    %565 = vperm.xlu0 %564, %v548
    %v566 = vpop.permute.xlu0 %565
    %v568 = vperm.slane %v549, 2
    %v569 = vmul.f32 %v566, %v568
    %v570 = vadd.f32 %v563, %v569
    %571 = vset.pattern.permute.xlu0 3
    %572 = vperm.xlu0 %571, %v548
    %v573 = vpop.permute.xlu0 %572
    %v575 = vperm.slane %v549, 3
    %v576 = vmul.f32 %v573, %v575
    %v577 = vadd.f32 %v570, %v576
    %v578 = vperm.slane %v549, 4
    %v579 = vadd.f32 %v577, %v578
    %580 = vst.msk [vmem:[#allocation10] sm:$0x3] %vm105, %v579
    // Predicated region
    $region46: #{pallas_forward.1} parent=1 // pred_check
      _
    $region47: #{pallas_forward.1} parent=1 // pred_check_branch
      %582 = sbr.rel (0) target = $region49
    $region48: #{pallas_forward.1} parent=1 // pred_region
      %584 = vsyncadd [#allocation3], 0
      %s586 = sshll.u32 [#allocation10], 4
      %s587 = int_to_ptr.vmem [resolvable:$true] %s586
      %s588 = sshll.u32 %s7, 4
      %s589 = int_to_ptr.hbm [resolvable:$true] %s588
      %591 = dma.vmem_to_hbm [thread:$0]  %s587, 32, %s589, [#allocation3]
    $region49: #{pallas_forward.1} parent=1 // pred_fallthru
      _
    // Predicated region
    $region50: #{pallas_forward.1} parent=1 // pred_check
      _
    $region51: #{pallas_forward.1} parent=1 // pred_check_branch
      %593 = sbr.rel (0) target = $region53
    $region52: #{pallas_forward.1} parent=1 // pred_region
      %595 = dma.done [#allocation3], 32
    $region53: #{pallas_forward.1} parent=1 // pred_fallthru
      _
    %596 = vsyncpa [#allocation3], 1
    %597 = vsyncpa [#allocation4], 1
    %598 = vsyncpa [#allocation6], 1
    %599 = vsyncpa [#allocation9], 1

</llo_original>
